<compile_context>
chip_gen: v7x
topology: tpu7x:2x2x1
jax: 0.10.0
libtpu: 0.0.40
codegen_flags: <defaults>
</compile_context>

<pallas_src>
import functools

import jax
import jax.numpy as jnp
from jax.experimental import pallas as pl
from jax.experimental.pallas import tpu as pltpu

LANE = 128          # TPU lane width: matmul output columns padded to this


def _round_up(x, m):
    return ((x + m - 1) // m) * m


# ---------------------------------------------------------------------------
# Pallas kernel: fused matmul + bias + activation, lane-dense 128-wide output
# ---------------------------------------------------------------------------
def _matmul_bias_act_kernel(x_ref, w_ref, b_ref, o_ref, *, act):
    # bf16 operands, f32 accumulation on the MXU
    acc = jnp.dot(x_ref[...], w_ref[...], preferred_element_type=jnp.float32)
    acc = acc + b_ref[...]                       # f32 epilogue
    if act == "relu":
        acc = jnp.maximum(acc, 0.0)
    elif act == "tanh":
        acc = jnp.tanh(acc)
    o_ref[...] = acc.astype(o_ref.dtype)         # full 128-wide unmasked store


def _matmul_bias_act(patches, w2, bias, act, out_dtype):
    """patches: (M, K) bf16, w2: (K, Cout) f32, bias: (Cout,) -> (M, Cout)."""
    M, K = patches.shape
    Cout = w2.shape[1]
    Cp = _round_up(Cout, LANE)                   # lane-dense output width
    # 2 row-blocks only where there are enough rows to feed both v7x TCs
    # (enc1 M=512, dec3 M=578); tiny layers use one block so single-TC
    # v5e/v6e never pay an extra serial grid step.
    row_blocks = 2 if M >= 512 else 1
    Mp = _round_up(M, 16 * row_blocks)           # 16-row multiple: bf16 packing
    TM = Mp // row_blocks                        # one big tile per TensorCore

    x = patches.astype(jnp.bfloat16)             # no-op: already bf16 pre-im2col
    if Mp != M:
        x = jnp.pad(x, ((0, Mp - M), (0, 0)))
    w_pad = jnp.pad(w2, ((0, 0), (0, Cp - Cout))).astype(jnp.bfloat16)
    b_pad = jnp.pad(bias, (0, Cp - Cout)).astype(jnp.float32).reshape(1, Cp)

    out = pl.pallas_call(
        functools.partial(_matmul_bias_act_kernel, act=act),
        out_shape=jax.ShapeDtypeStruct((Mp, Cp), out_dtype),
        grid=(row_blocks,),
        in_specs=[
            pl.BlockSpec((TM, K), lambda i: (i, 0)),
            pl.BlockSpec((K, Cp), lambda i: (0, 0)),
            pl.BlockSpec((1, Cp), lambda i: (0, 0)),
        ],
        out_specs=pl.BlockSpec((TM, Cp), lambda i: (i, 0)),
        compiler_params=pltpu.CompilerParams(
            dimension_semantics=("parallel",)),
    )(x, w_pad, b_pad)
    return out[:M, :Cout]


# ---------------------------------------------------------------------------
# Conv2d: im2col (XLA glue, bf16) + fused Pallas matmul
# ---------------------------------------------------------------------------
def conv2d(x_nhwc, w, b, stride, padding, act, out_dtype=jnp.bfloat16):
    """x: (N,H,W,Cin); w: PyTorch layout (Cout,Cin,KH,KW); b: (Cout,)."""
    N, H, W_, Cin = x_nhwc.shape
    Cout, _, KH, KW = w.shape
    x_bf = x_nhwc.astype(jnp.bfloat16)           # cast BEFORE im2col duplication
    xp = jnp.pad(x_bf, ((0, 0), (padding, padding), (padding, padding), (0, 0)))
    OH = (H + 2 * padding - KH) // stride + 1
    OW = (W_ + 2 * padding - KW) // stride + 1
    cols = []
    for dy in range(KH):
        for dx in range(KW):
            cols.append(xp[:, dy:dy + stride * (OH - 1) + 1:stride,
                              dx:dx + stride * (OW - 1) + 1:stride, :])
    # (N, OH, OW, KH*KW, Cin) -> (M, K);  K-order = (dy, dx, cin)
    patches = jnp.stack(cols, axis=3).reshape(N * OH * OW, KH * KW * Cin)
    w2 = jnp.transpose(w, (2, 3, 1, 0)).reshape(KH * KW * Cin, Cout)
    out = _matmul_bias_act(patches, w2, b, act, out_dtype)
    return out.reshape(N, OH, OW, Cout)


# ---------------------------------------------------------------------------
# ConvTranspose2d (stride=2, k=4): polyphase decomposition (no zero-dilation)
# ---------------------------------------------------------------------------
def conv_transpose2d(x_nhwc, w, b, stride, padding, act, out_dtype=jnp.bfloat16):
    """y[oy,ox] = sum_{ky,kx} x[(oy+p-ky)/2,(ox+p-kx)/2] * w[:,:,ky,kx].

    Only taps with ky ≡ (oy+p) (mod 2) contribute, so every output pixel
    reads a 2x2 window of x; the 4 output phases use 4 different 2x2
    sub-kernels.  All 4 phases are computed by a single matmul whose
    column dimension is 4*Cout (<=128, still one lane-dense tile).
    """
    N, H, W_, Cin = x_nhwc.shape
    _, Cout, KH, KW = w.shape
    assert stride == 2 and KH == 4 and KW == 4, "specialized to stride-2, 4x4"
    p = padding
    OH = (H - 1) * stride + KH - 2 * p
    OW = (W_ - 1) * stride + KW - 2 * p

    # 2x2 windows over x padded by 1, base positions u in [0,H], v in [0,W]
    x_bf = x_nhwc.astype(jnp.bfloat16)           # cast BEFORE window duplication
    xp = jnp.pad(x_bf, ((0, 0), (1, 1), (1, 1), (0, 0)))
    wins = []
    for a in range(2):
        for c in range(2):
            wins.append(xp[:, a:a + H + 1, c:c + W_ + 1, :])
    patches = jnp.stack(wins, axis=3).reshape(N * (H + 1) * (W_ + 1), 4 * Cin)

    # sub-kernel taps: ky = py + 2*(1-a),  kx = px + 2*(1-b)
    ar = jnp.arange(2)
    tap = ar[None, :] + 2 * (1 - ar[:, None])        # [a_or_b, phase] -> ky/kx
    wt = w[:, :, tap, :]                             # (Cin, Cout, a, py, KW)
    wt = wt[:, :, :, :, tap]                         # (Cin, Cout, a, py, b, px)
    wt = jnp.transpose(wt, (2, 4, 0, 3, 5, 1))       # (a, b, Cin, py, px, Cout)
    w2 = wt.reshape(4 * Cin, 4 * Cout)
    b4 = jnp.tile(b, 4)                              # bias per phase

    out = _matmul_bias_act(patches, w2, b4, act, out_dtype)
    out = out.reshape(N, H + 1, W_ + 1, 2, 2, Cout)  # (.., py, px, Cout)

    # phase interleave as pure layout ops (no gather):
    # (N, ty, tx, py, px, C) -> (N, ty, py, tx, px, C) -> (N, 2H+2, 2W+2, C);
    # row index = 2*ty + py = oy + p, so static-slice rows/cols [p : p+OH/OW].
    out = jnp.transpose(out, (0, 1, 3, 2, 4, 5))
    out = out.reshape(N, 2 * (H + 1), 2 * (W_ + 1), Cout)
    return out[:, p:p + OH, p:p + OW, :]


# ---------------------------------------------------------------------------
# MaxPool (trivial XLA glue — no window duplication, no Pallas kernel needed)
# ---------------------------------------------------------------------------
def maxpool_2x2_s2(x):
    N, H, W_, C = x.shape
    return x.reshape(N, H // 2, 2, W_ // 2, 2, C).max(axis=(2, 4))


def maxpool_2x2_s1(x):
    return jnp.maximum(jnp.maximum(x[:, :-1, :-1, :], x[:, :-1, 1:, :]),
                       jnp.maximum(x[:, 1:, :-1, :], x[:, 1:, 1:, :]))


# ---------------------------------------------------------------------------
# Model: parameters + forward
# ---------------------------------------------------------------------------
def init_params(key):
    def conv_init(k, cout, cin, ks):
        bound = 1.0 / (cin * ks * ks) ** 0.5
        kw, kb = jax.random.split(k)
        w = jax.random.uniform(kw, (cout, cin, ks, ks), jnp.float32, -bound, bound)
        b = jax.random.uniform(kb, (cout,), jnp.float32, -bound, bound)
        return w, b

    def deconv_init(k, cin, cout, ks):
        bound = 1.0 / (cout * ks * ks) ** 0.5
        kw, kb = jax.random.split(k)
        w = jax.random.uniform(kw, (cin, cout, ks, ks), jnp.float32, -bound, bound)
        b = jax.random.uniform(kb, (cout,), jnp.float32, -bound, bound)
        return w, b

    keys = jax.random.split(key, 5)
    return {
        "enc1": conv_init(keys[0], 16, 3, 4),
        "enc2": conv_init(keys[1], 8, 16, 4),
        "dec1": deconv_init(keys[2], 8, 16, 4),
        "dec2": deconv_init(keys[3], 16, 8, 4),
        "dec3": deconv_init(keys[4], 8, 3, 4),
    }


def autoencoder_forward(x_nchw, params):
    x = jnp.transpose(x_nchw, (0, 2, 3, 1))          # NCHW -> NHWC
    # encoder
    w, b = params["enc1"]
    x = conv2d(x, w, b, stride=2, padding=1, act="relu")          # bf16 out
    x = maxpool_2x2_s2(x)
    w, b = params["enc2"]
    x = conv2d(x, w, b, stride=2, padding=1, act="relu")          # bf16 out
    x = maxpool_2x2_s1(x)
    # decoder
    w, b = params["dec1"]
    x = conv_transpose2d(x, w, b, stride=2, padding=0, act="relu")  # bf16 out
    w, b = params["dec2"]
    x = conv_transpose2d(x, w, b, stride=2, padding=1, act="relu")  # bf16 out
    w, b = params["dec3"]
    x = conv_transpose2d(x, w, b, stride=2, padding=1, act="tanh",
                         out_dtype=jnp.float32)                     # f32 out
    return jnp.transpose(x, (0, 3, 1, 2))            # NHWC -> NCHW


if __name__ == "__main__":
    key = jax.random.PRNGKey(0)
    k_param, k_x = jax.random.split(key)
    params = init_params(k_param)
    # CIFAR-10-like input: batch=2, 3 channels, 32x32 spatial (NCHW)
    x = jax.random.normal(k_x, (2, 3, 32, 32), jnp.float32)

    fwd = jax.jit(autoencoder_forward)
    out = jax.block_until_ready(fwd(x, params))

    assert out.shape == (2, 3, 32, 32), out.shape
    assert out.dtype == jnp.float32, out.dtype
    assert bool(jnp.all(jnp.isfinite(out)))
    print("KERNEL_OK")
</pallas_src>

<mosaic_0001>
module attributes {stable_mosaic.version = 11 : i64} {
  func.func @_matmul_bias_act_kernel(%arg0: i32, %arg1: memref<256x48xbf16, #tpu.memory_space<vmem>>, %arg2: memref<48x128xbf16, #tpu.memory_space<vmem>>, %arg3: memref<1x128xf32, #tpu.memory_space<vmem>>, %arg4: memref<256x128xbf16, #tpu.memory_space<vmem>>) attributes {dimension_semantics = [#tpu.dimension_semantics<parallel>], iteration_bounds = array<i64: 2>, scalar_prefetch = 0 : i64, scratch_operands = 0 : i64, tpu.core_type = #tpu.core_type<tc>, window_params = [{transform_indices = @transform_0, window_bounds = array<i64: 256, 48>}, {pipeline_mode = #tpu.pipeline_mode<synchronous>, transform_indices = @transform_1, window_bounds = array<i64: 48, 128>}, {pipeline_mode = #tpu.pipeline_mode<synchronous>, transform_indices = @transform_2, window_bounds = array<i64: 1, 128>}, {transform_indices = @transform_3, window_bounds = array<i64: 256, 128>}]} {
    %c0 = arith.constant 0 : index
    %c0_0 = arith.constant 0 : index
    %0 = vector.load %arg1[%c0, %c0_0] : memref<256x48xbf16, #tpu.memory_space<vmem>>, vector<256x48xbf16>
    %c0_1 = arith.constant 0 : index
    %c0_2 = arith.constant 0 : index
    %1 = vector.load %arg2[%c0_1, %c0_2] : memref<48x128xbf16, #tpu.memory_space<vmem>>, vector<48x128xbf16>
    %cst = arith.constant dense<0.000000e+00> : vector<256x128xf32>
    %2 = tpu.matmul %0, %1, %cst {dimension_numbers = #tpu.dot_dimension_numbers<[1], [0], [0], [1], [0, 0, 1, 1], [], []>} : vector<256x48xbf16>, vector<48x128xbf16>, vector<256x128xf32> -> vector<256x128xf32>
    %c0_3 = arith.constant 0 : index
    %c0_4 = arith.constant 0 : index
    %3 = vector.load %arg3[%c0_3, %c0_4] : memref<1x128xf32, #tpu.memory_space<vmem>>, vector<1x128xf32>
    %4 = vector.broadcast %3 : vector<1x128xf32> to vector<256x128xf32>
    %5 = arith.addf %2, %4 : vector<256x128xf32>
    %cst_5 = arith.constant 0.000000e+00 : f32
    %6 = vector.broadcast %cst_5 : f32 to vector<256x128xf32>
    %7 = arith.maximumf %5, %6 : vector<256x128xf32>
    %8 = arith.truncf %7 : vector<256x128xf32> to vector<256x128xbf16>
    %c0_6 = arith.constant 0 : index
    %c0_7 = arith.constant 0 : index
    %9 = vector.load %arg4[%c0_6, %c0_7] : memref<256x128xbf16, #tpu.memory_space<vmem>>, vector<256x128xbf16>
    tpu.vector_store %arg4[%c0_6, %c0_7], %8 {strides = array<i32>} : memref<256x128xbf16, #tpu.memory_space<vmem>>, vector<256x128xbf16>,
    return
  }
  func.func @transform_0(%arg0: i32) -> (i32, i32) {
    %c0_i32 = arith.constant 0 : i32
    %c0_i32_0 = arith.constant 0 : i32
    return %arg0, %c0_i32 : i32, i32
  }
  func.func @transform_1(%arg0: i32) -> (i32, i32) {
    %c0_i32 = arith.constant 0 : i32
    %c0_i32_0 = arith.constant 0 : i32
    %c0_i32_1 = arith.constant 0 : i32
    return %c0_i32, %c0_i32_0 : i32, i32
  }
  func.func @transform_2(%arg0: i32) -> (i32, i32) {
    %c0_i32 = arith.constant 0 : i32
    %c0_i32_0 = arith.constant 0 : i32
    %c0_i32_1 = arith.constant 0 : i32
    return %c0_i32, %c0_i32_0 : i32, i32
  }
  func.func @transform_3(%arg0: i32) -> (i32, i32) {
    %c0_i32 = arith.constant 0 : i32
    %c0_i32_0 = arith.constant 0 : i32
    return %arg0, %c0_i32 : i32, i32
  }
}

module attributes {stable_mosaic.version = 11 : i64} {
  func.func @_matmul_bias_act_kernel(%arg0: i32, %arg1: memref<32x256xbf16, #tpu.memory_space<vmem>>, %arg2: memref<256x128xbf16, #tpu.memory_space<vmem>>, %arg3: memref<1x128xf32, #tpu.memory_space<vmem>>, %arg4: memref<32x128xbf16, #tpu.memory_space<vmem>>) attributes {dimension_semantics = [#tpu.dimension_semantics<parallel>], iteration_bounds = array<i64: 1>, scalar_prefetch = 0 : i64, scratch_operands = 0 : i64, tpu.core_type = #tpu.core_type<tc>, window_params = [{transform_indices = @transform_0, window_bounds = array<i64: 32, 256>}, {pipeline_mode = #tpu.pipeline_mode<synchronous>, transform_indices = @transform_1, window_bounds = array<i64: 256, 128>}, {pipeline_mode = #tpu.pipeline_mode<synchronous>, transform_indices = @transform_2, window_bounds = array<i64: 1, 128>}, {transform_indices = @transform_3, window_bounds = array<i64: 32, 128>}]} {
    %c0 = arith.constant 0 : index
    %c0_0 = arith.constant 0 : index
    %0 = vector.load %arg1[%c0, %c0_0] : memref<32x256xbf16, #tpu.memory_space<vmem>>, vector<32x256xbf16>
    %c0_1 = arith.constant 0 : index
    %c0_2 = arith.constant 0 : index
    %1 = vector.load %arg2[%c0_1, %c0_2] : memref<256x128xbf16, #tpu.memory_space<vmem>>, vector<256x128xbf16>
    %cst = arith.constant dense<0.000000e+00> : vector<32x128xf32>
    %2 = tpu.matmul %0, %1, %cst {dimension_numbers = #tpu.dot_dimension_numbers<[1], [0], [0], [1], [0, 0, 1, 1], [], []>} : vector<32x256xbf16>, vector<256x128xbf16>, vector<32x128xf32> -> vector<32x128xf32>
    %c0_3 = arith.constant 0 : index
    %c0_4 = arith.constant 0 : index
    %3 = vector.load %arg3[%c0_3, %c0_4] : memref<1x128xf32, #tpu.memory_space<vmem>>, vector<1x128xf32>
    %4 = vector.broadcast %3 : vector<1x128xf32> to vector<32x128xf32>
    %5 = arith.addf %2, %4 : vector<32x128xf32>
    %cst_5 = arith.constant 0.000000e+00 : f32
    %6 = vector.broadcast %cst_5 : f32 to vector<32x128xf32>
    %7 = arith.maximumf %5, %6 : vector<32x128xf32>
    %8 = arith.truncf %7 : vector<32x128xf32> to vector<32x128xbf16>
    %c0_6 = arith.constant 0 : index
    %c0_7 = arith.constant 0 : index
    %9 = vector.load %arg4[%c0_6, %c0_7] : memref<32x128xbf16, #tpu.memory_space<vmem>>, vector<32x128xbf16>
    tpu.vector_store %arg4[%c0_6, %c0_7], %8 {strides = array<i32>} : memref<32x128xbf16, #tpu.memory_space<vmem>>, vector<32x128xbf16>,
    return
  }
  func.func @transform_0(%arg0: i32) -> (i32, i32) {
    %c0_i32 = arith.constant 0 : i32
    %c0_i32_0 = arith.constant 0 : i32
    return %arg0, %c0_i32 : i32, i32
  }
  func.func @transform_1(%arg0: i32) -> (i32, i32) {
    %c0_i32 = arith.constant 0 : i32
    %c0_i32_0 = arith.constant 0 : i32
    %c0_i32_1 = arith.constant 0 : i32
    return %c0_i32, %c0_i32_0 : i32, i32
  }
  func.func @transform_2(%arg0: i32) -> (i32, i32) {
    %c0_i32 = arith.constant 0 : i32
    %c0_i32_0 = arith.constant 0 : i32
    %c0_i32_1 = arith.constant 0 : i32
    return %c0_i32, %c0_i32_0 : i32, i32
  }
  func.func @transform_3(%arg0: i32) -> (i32, i32) {
    %c0_i32 = arith.constant 0 : i32
    %c0_i32_0 = arith.constant 0 : i32
    return %arg0, %c0_i32 : i32, i32
  }
}

module attributes {stable_mosaic.version = 11 : i64} {
  func.func @_matmul_bias_act_kernel(%arg0: i32, %arg1: memref<32x32xbf16, #tpu.memory_space<vmem>>, %arg2: memref<32x128xbf16, #tpu.memory_space<vmem>>, %arg3: memref<1x128xf32, #tpu.memory_space<vmem>>, %arg4: memref<32x128xbf16, #tpu.memory_space<vmem>>) attributes {dimension_semantics = [#tpu.dimension_semantics<parallel>], iteration_bounds = array<i64: 1>, scalar_prefetch = 0 : i64, scratch_operands = 0 : i64, tpu.core_type = #tpu.core_type<tc>, window_params = [{transform_indices = @transform_0, window_bounds = array<i64: 32, 32>}, {pipeline_mode = #tpu.pipeline_mode<synchronous>, transform_indices = @transform_1, window_bounds = array<i64: 32, 128>}, {pipeline_mode = #tpu.pipeline_mode<synchronous>, transform_indices = @transform_2, window_bounds = array<i64: 1, 128>}, {transform_indices = @transform_3, window_bounds = array<i64: 32, 128>}]} {
    %c0 = arith.constant 0 : index
    %c0_0 = arith.constant 0 : index
    %0 = vector.load %arg1[%c0, %c0_0] : memref<32x32xbf16, #tpu.memory_space<vmem>>, vector<32x32xbf16>
    %c0_1 = arith.constant 0 : index
    %c0_2 = arith.constant 0 : index
    %1 = vector.load %arg2[%c0_1, %c0_2] : memref<32x128xbf16, #tpu.memory_space<vmem>>, vector<32x128xbf16>
    %cst = arith.constant dense<0.000000e+00> : vector<32x128xf32>
    %2 = tpu.matmul %0, %1, %cst {dimension_numbers = #tpu.dot_dimension_numbers<[1], [0], [0], [1], [0, 0, 1, 1], [], []>} : vector<32x32xbf16>, vector<32x128xbf16>, vector<32x128xf32> -> vector<32x128xf32>
    %c0_3 = arith.constant 0 : index
    %c0_4 = arith.constant 0 : index
    %3 = vector.load %arg3[%c0_3, %c0_4] : memref<1x128xf32, #tpu.memory_space<vmem>>, vector<1x128xf32>
    %4 = vector.broadcast %3 : vector<1x128xf32> to vector<32x128xf32>
    %5 = arith.addf %2, %4 : vector<32x128xf32>
    %cst_5 = arith.constant 0.000000e+00 : f32
    %6 = vector.broadcast %cst_5 : f32 to vector<32x128xf32>
    %7 = arith.maximumf %5, %6 : vector<32x128xf32>
    %8 = arith.truncf %7 : vector<32x128xf32> to vector<32x128xbf16>
    %c0_6 = arith.constant 0 : index
    %c0_7 = arith.constant 0 : index
    %9 = vector.load %arg4[%c0_6, %c0_7] : memref<32x128xbf16, #tpu.memory_space<vmem>>, vector<32x128xbf16>
    tpu.vector_store %arg4[%c0_6, %c0_7], %8 {strides = array<i32>} : memref<32x128xbf16, #tpu.memory_space<vmem>>, vector<32x128xbf16>,
    return
  }
  func.func @transform_0(%arg0: i32) -> (i32, i32) {
    %c0_i32 = arith.constant 0 : i32
    %c0_i32_0 = arith.constant 0 : i32
    return %arg0, %c0_i32 : i32, i32
  }
  func.func @transform_1(%arg0: i32) -> (i32, i32) {
    %c0_i32 = arith.constant 0 : i32
    %c0_i32_0 = arith.constant 0 : i32
    %c0_i32_1 = arith.constant 0 : i32
    return %c0_i32, %c0_i32_0 : i32, i32
  }
  func.func @transform_2(%arg0: i32) -> (i32, i32) {
    %c0_i32 = arith.constant 0 : i32
    %c0_i32_0 = arith.constant 0 : i32
    %c0_i32_1 = arith.constant 0 : i32
    return %c0_i32, %c0_i32_0 : i32, i32
  }
  func.func @transform_3(%arg0: i32) -> (i32, i32) {
    %c0_i32 = arith.constant 0 : i32
    %c0_i32_0 = arith.constant 0 : i32
    return %arg0, %c0_i32 : i32, i32
  }
}

module attributes {stable_mosaic.version = 11 : i64} {
  func.func @_matmul_bias_act_kernel(%arg0: i32, %arg1: memref<176x64xbf16, #tpu.memory_space<vmem>>, %arg2: memref<64x128xbf16, #tpu.memory_space<vmem>>, %arg3: memref<1x128xf32, #tpu.memory_space<vmem>>, %arg4: memref<176x128xbf16, #tpu.memory_space<vmem>>) attributes {dimension_semantics = [#tpu.dimension_semantics<parallel>], iteration_bounds = array<i64: 1>, scalar_prefetch = 0 : i64, scratch_operands = 0 : i64, tpu.core_type = #tpu.core_type<tc>, window_params = [{transform_indices = @transform_0, window_bounds = array<i64: 176, 64>}, {pipeline_mode = #tpu.pipeline_mode<synchronous>, transform_indices = @transform_1, window_bounds = array<i64: 64, 128>}, {pipeline_mode = #tpu.pipeline_mode<synchronous>, transform_indices = @transform_2, window_bounds = array<i64: 1, 128>}, {transform_indices = @transform_3, window_bounds = array<i64: 176, 128>}]} {
    %c0 = arith.constant 0 : index
    %c0_0 = arith.constant 0 : index
    %0 = vector.load %arg1[%c0, %c0_0] : memref<176x64xbf16, #tpu.memory_space<vmem>>, vector<176x64xbf16>
    %c0_1 = arith.constant 0 : index
    %c0_2 = arith.constant 0 : index
    %1 = vector.load %arg2[%c0_1, %c0_2] : memref<64x128xbf16, #tpu.memory_space<vmem>>, vector<64x128xbf16>
    %cst = arith.constant dense<0.000000e+00> : vector<176x128xf32>
    %2 = tpu.matmul %0, %1, %cst {dimension_numbers = #tpu.dot_dimension_numbers<[1], [0], [0], [1], [0, 0, 1, 1], [], []>} : vector<176x64xbf16>, vector<64x128xbf16>, vector<176x128xf32> -> vector<176x128xf32>
    %c0_3 = arith.constant 0 : index
    %c0_4 = arith.constant 0 : index
    %3 = vector.load %arg3[%c0_3, %c0_4] : memref<1x128xf32, #tpu.memory_space<vmem>>, vector<1x128xf32>
    %4 = vector.broadcast %3 : vector<1x128xf32> to vector<176x128xf32>
    %5 = arith.addf %2, %4 : vector<176x128xf32>
    %cst_5 = arith.constant 0.000000e+00 : f32
    %6 = vector.broadcast %cst_5 : f32 to vector<176x128xf32>
    %7 = arith.maximumf %5, %6 : vector<176x128xf32>
    %8 = arith.truncf %7 : vector<176x128xf32> to vector<176x128xbf16>
    %c0_6 = arith.constant 0 : index
    %c0_7 = arith.constant 0 : index
    %9 = vector.load %arg4[%c0_6, %c0_7] : memref<176x128xbf16, #tpu.memory_space<vmem>>, vector<176x128xbf16>
    tpu.vector_store %arg4[%c0_6, %c0_7], %8 {strides = array<i32>} : memref<176x128xbf16, #tpu.memory_space<vmem>>, vector<176x128xbf16>,
    return
  }
  func.func @transform_0(%arg0: i32) -> (i32, i32) {
    %c0_i32 = arith.constant 0 : i32
    %c0_i32_0 = arith.constant 0 : i32
    return %arg0, %c0_i32 : i32, i32
  }
  func.func @transform_1(%arg0: i32) -> (i32, i32) {
    %c0_i32 = arith.constant 0 : i32
    %c0_i32_0 = arith.constant 0 : i32
    %c0_i32_1 = arith.constant 0 : i32
    return %c0_i32, %c0_i32_0 : i32, i32
  }
  func.func @transform_2(%arg0: i32) -> (i32, i32) {
    %c0_i32 = arith.constant 0 : i32
    %c0_i32_0 = arith.constant 0 : i32
    %c0_i32_1 = arith.constant 0 : i32
    return %c0_i32, %c0_i32_0 : i32, i32
  }
  func.func @transform_3(%arg0: i32) -> (i32, i32) {
    %c0_i32 = arith.constant 0 : i32
    %c0_i32_0 = arith.constant 0 : i32
    return %arg0, %c0_i32 : i32, i32
  }
}

module attributes {stable_mosaic.version = 11 : i64} {
  func.func @_matmul_bias_act_kernel(%arg0: i32, %arg1: memref<304x32xbf16, #tpu.memory_space<vmem>>, %arg2: memref<32x128xbf16, #tpu.memory_space<vmem>>, %arg3: memref<1x128xf32, #tpu.memory_space<vmem>>, %arg4: memref<304x128xf32, #tpu.memory_space<vmem>>) attributes {dimension_semantics = [#tpu.dimension_semantics<parallel>], iteration_bounds = array<i64: 2>, scalar_prefetch = 0 : i64, scratch_operands = 0 : i64, tpu.core_type = #tpu.core_type<tc>, window_params = [{transform_indices = @transform_0, window_bounds = array<i64: 304, 32>}, {pipeline_mode = #tpu.pipeline_mode<synchronous>, transform_indices = @transform_1, window_bounds = array<i64: 32, 128>}, {pipeline_mode = #tpu.pipeline_mode<synchronous>, transform_indices = @transform_2, window_bounds = array<i64: 1, 128>}, {transform_indices = @transform_3, window_bounds = array<i64: 304, 128>}]} {
    %c0 = arith.constant 0 : index
    %c0_0 = arith.constant 0 : index
    %0 = vector.load %arg1[%c0, %c0_0] : memref<304x32xbf16, #tpu.memory_space<vmem>>, vector<304x32xbf16>
    %c0_1 = arith.constant 0 : index
    %c0_2 = arith.constant 0 : index
    %1 = vector.load %arg2[%c0_1, %c0_2] : memref<32x128xbf16, #tpu.memory_space<vmem>>, vector<32x128xbf16>
    %cst = arith.constant dense<0.000000e+00> : vector<304x128xf32>
    %2 = tpu.matmul %0, %1, %cst {dimension_numbers = #tpu.dot_dimension_numbers<[1], [0], [0], [1], [0, 0, 1, 1], [], []>} : vector<304x32xbf16>, vector<32x128xbf16>, vector<304x128xf32> -> vector<304x128xf32>
    %c0_3 = arith.constant 0 : index
    %c0_4 = arith.constant 0 : index
    %3 = vector.load %arg3[%c0_3, %c0_4] : memref<1x128xf32, #tpu.memory_space<vmem>>, vector<1x128xf32>
    %4 = vector.broadcast %3 : vector<1x128xf32> to vector<304x128xf32>
    %5 = arith.addf %2, %4 : vector<304x128xf32>
    %6 = math.tanh %5 : vector<304x128xf32>
    %c0_5 = arith.constant 0 : index
    %c0_6 = arith.constant 0 : index
    %7 = vector.load %arg4[%c0_5, %c0_6] : memref<304x128xf32, #tpu.memory_space<vmem>>, vector<304x128xf32>
    tpu.vector_store %arg4[%c0_5, %c0_6], %6 {strides = array<i32>} : memref<304x128xf32, #tpu.memory_space<vmem>>, vector<304x128xf32>,
    return
  }
  func.func @transform_0(%arg0: i32) -> (i32, i32) {
    %c0_i32 = arith.constant 0 : i32
    %c0_i32_0 = arith.constant 0 : i32
    return %arg0, %c0_i32 : i32, i32
  }
  func.func @transform_1(%arg0: i32) -> (i32, i32) {
    %c0_i32 = arith.constant 0 : i32
    %c0_i32_0 = arith.constant 0 : i32
    %c0_i32_1 = arith.constant 0 : i32
    return %c0_i32, %c0_i32_0 : i32, i32
  }
  func.func @transform_2(%arg0: i32) -> (i32, i32) {
    %c0_i32 = arith.constant 0 : i32
    %c0_i32_0 = arith.constant 0 : i32
    %c0_i32_1 = arith.constant 0 : i32
    return %c0_i32, %c0_i32_0 : i32, i32
  }
  func.func @transform_3(%arg0: i32) -> (i32, i32) {
    %c0_i32 = arith.constant 0 : i32
    %c0_i32_0 = arith.constant 0 : i32
    return %arg0, %c0_i32 : i32, i32
  }
}

</mosaic_0001>

<llo_original>
// kernel: tile.18
$region0: #{tile.18}
  #allocation2 [shape = 's32[1]{0}', space=sflag, size = 0x4, scoped, tag = 'scoped memory for tile.18']
  %s0 = inlined_call_operand.hbm [shape: f32[16], index: 0, kind: input, shape index: {}]
  %s1 = inlined_call_operand.vmem [shape: f32[4,16], index: 1, kind: output, shape index: {}]
  $region1: #{tile.18} parent=0
    #allocation0 [shape = 'u8[512]{0}', space=vmem, size = 0x400, scoped, tag = 'operand span for operand 0']
    #allocation1 [shape = 's32[1]{0}', space=sflag, size = 0x4, scoped, tag = 'scoped memory for tile.18']
    %2 = vsyncpa [#allocation1], 0
    // Predicated region
    $region2: #{tile.18} parent=1 // pred_check
      _
    $region3: #{tile.18} parent=1 // pred_check_branch
      %4 = sbr.rel (0) target = $region5
    $region4: #{tile.18} parent=1 // pred_region
      %s6 = ssub.s32 16, 16
      %7 = vsyncadd [#allocation1], %s6
      %s9 = sshll.u32 [#allocation0], 4
      %s10 = int_to_ptr.vmem [resolvable:$true] %s9
      %12 = dma.hbm_to_vmem [thread:$0]  %s0, 16, %s10, [#allocation1]
    $region5: #{tile.18} parent=1 // pred_fallthru
      _
    // Predicated region
    $region6: #{tile.18} parent=1 // pred_check
      _
    $region7: #{tile.18} parent=1 // pred_check_branch
      %14 = sbr.rel (0) target = $region9
    $region8: #{tile.18} parent=1 // pred_region
      %15 = dma.done [#allocation1], 16
    $region9: #{tile.18} parent=1 // pred_fallthru
      _
    %v16 = vld [vmem:[#allocation0] ss:$0 sm:$0xff]
    %17 = vst [vmem:[%s1] sm:$0xf] %v16
    %18 = vsyncpa [#allocation1], 1

// kernel: tile.19
$region0: #{tile.19}
  %s0 = inlined_call_operand.vmem [shape: f32[4,16], index: 0, kind: input, shape index: {}]
  %s1 = inlined_call_operand.vmem [shape: f32[64], index: 1, kind: output, shape index: {}]
  $region1: #{tile.19} parent=0
    #allocation0 [shape = 'u8[4096]{0}', space=vmem, size = 0x1000, scoped, tag = 'scoped mem for output reshape']
    #allocation1 [shape = 'u8[4096]{0}', space=vmem, size = 0x1000, scoped, tag = 'scoped mem for input reshape']
    %s3 = sshllo.u32 0, 4
    %v4 = vld [vmem:[%s0] sm:%s3]
    %5 = vst [vmem:[#allocation1] sm:%s3] %v4
    %v6 = vld [vmem:[#allocation1] sm:$0x1]
    %vm7 = vcmask 130048
    %8 = vst.msk [vmem:[#allocation0] sm:$0x1] %vm7, %v6
    %s9 = scalar_lea.vmem [#allocation1], 3
    %v10 = vld [vmem:[%s9] sm:$0x1]
    %11 = vrot.lane.b32.xlu0 %v10, 48
    %v12 = vpop.permute.xlu0 %11
    %vm13 = vcmask 523648
    %14 = vst.msk [vmem:[#allocation0] sm:$0x1] %vm13, %v12
    %s15 = scalar_lea.vmem [#allocation1], 2
    %v16 = vld [vmem:[%s15] sm:$0x1]
    %17 = vrot.lane.b32.xlu0 %v16, 32
    %v18 = vpop.permute.xlu0 %17
    %vm19 = vcmask 392448
    %20 = vst.msk [vmem:[#allocation0] sm:$0x1] %vm19, %v18
    %s21 = scalar_lea.vmem [#allocation1], 1
    %v22 = vld [vmem:[%s21] sm:$0x1]
    %23 = vrot.lane.b32.xlu0 %v22, 16
    %v24 = vpop.permute.xlu0 %23
    %vm25 = vcmask 261248
    %26 = vst.msk [vmem:[#allocation0] sm:$0x1] %vm25, %v24
    %s28 = sshllo.u32 0, 1
    %v30 = vld [vmem:[#allocation0] sm:%s28]
    %s31 = sshllo.u32 0, 1
    %32 = vst [vmem:[%s1] sm:%s31] %v30

// kernel: tile.23
$region0: #{tile.23}
  #allocation2 [shape = 's32[1]{0}', space=sflag, size = 0x4, scoped, tag = 'scoped memory for tile.23']
  %s0 = inlined_call_operand.hbm [shape: f32[8], index: 0, kind: input, shape index: {}]
  %s1 = inlined_call_operand.vmem [shape: f32[4,8], index: 1, kind: output, shape index: {}]
  $region1: #{tile.23} parent=0
    #allocation0 [shape = 'u8[512]{0}', space=vmem, size = 0x400, scoped, tag = 'operand span for operand 0']
    #allocation1 [shape = 's32[1]{0}', space=sflag, size = 0x4, scoped, tag = 'scoped memory for tile.23']
    %2 = vsyncpa [#allocation1], 0
    // Predicated region
    $region2: #{tile.23} parent=1 // pred_check
      _
    $region3: #{tile.23} parent=1 // pred_check_branch
      %4 = sbr.rel (0) target = $region5
    $region4: #{tile.23} parent=1 // pred_region
      %s6 = ssub.s32 16, 16
      %7 = vsyncadd [#allocation1], %s6
      %s9 = sshll.u32 [#allocation0], 4
      %s10 = int_to_ptr.vmem [resolvable:$true] %s9
      %12 = dma.hbm_to_vmem [thread:$0]  %s0, 16, %s10, [#allocation1]
    $region5: #{tile.23} parent=1 // pred_fallthru
      _
    // Predicated region
    $region6: #{tile.23} parent=1 // pred_check
      _
    $region7: #{tile.23} parent=1 // pred_check_branch
      %14 = sbr.rel (0) target = $region9
    $region8: #{tile.23} parent=1 // pred_region
      %15 = dma.done [#allocation1], 16
    $region9: #{tile.23} parent=1 // pred_fallthru
      _
    %v16 = vld [vmem:[#allocation0] ss:$0 sm:$0xff]
    %17 = vst [vmem:[%s1] sm:$0xf] %v16
    %18 = vsyncpa [#allocation1], 1

// kernel: tile.24
$region0: #{tile.24}
  %s0 = inlined_call_operand.vmem [shape: f32[4,8], index: 0, kind: input, shape index: {}]
  %s1 = inlined_call_operand.vmem [shape: f32[32], index: 1, kind: output, shape index: {}]
  $region1: #{tile.24} parent=0
    #allocation0 [shape = 'u8[4096]{0}', space=vmem, size = 0x1000, scoped, tag = 'scoped mem for output reshape']
    #allocation1 [shape = 'u8[4096]{0}', space=vmem, size = 0x1000, scoped, tag = 'scoped mem for input reshape']
    %s3 = sshllo.u32 0, 4
    %v4 = vld [vmem:[%s0] sm:%s3]
    %5 = vst [vmem:[#allocation1] sm:%s3] %v4
    %v6 = vld [vmem:[#allocation1] sm:$0x1]
    %vm7 = vcmask 64512
    %8 = vst.msk [vmem:[#allocation0] sm:$0x1] %vm7, %v6
    %s9 = scalar_lea.vmem [#allocation1], 3
    %v10 = vld [vmem:[%s9] sm:$0x1]
    %11 = vrot.lane.b32.xlu0 %v10, 24
    %v12 = vpop.permute.xlu0 %11
    %vm13 = vcmask 261312
    %14 = vst.msk [vmem:[#allocation0] sm:$0x1] %vm13, %v12
    %s15 = scalar_lea.vmem [#allocation1], 2
    %v16 = vld [vmem:[%s15] sm:$0x1]
    %17 = vrot.lane.b32.xlu0 %v16, 16
    %v18 = vpop.permute.xlu0 %17
    %vm19 = vcmask 195712
    %20 = vst.msk [vmem:[#allocation0] sm:$0x1] %vm19, %v18
    %s21 = scalar_lea.vmem [#allocation1], 1
    %v22 = vld [vmem:[%s21] sm:$0x1]
    %23 = vrot.lane.b32.xlu0 %v22, 8
    %v24 = vpop.permute.xlu0 %23
    %vm25 = vcmask 130112
    %26 = vst.msk [vmem:[#allocation0] sm:$0x1] %vm25, %v24
    %s28 = sshllo.u32 0, 1
    %v30 = vld [vmem:[#allocation0] sm:%s28]
    %s31 = sshllo.u32 0, 1
    %32 = vst [vmem:[%s1] sm:%s31] %v30

// kernel: tile.28
$region0: #{tile.28}
  #allocation2 [shape = 's32[1]{0}', space=sflag, size = 0x4, scoped, tag = 'scoped memory for tile.28']
  %s0 = inlined_call_operand.hbm [shape: f32[3], index: 0, kind: input, shape index: {}]
  %s1 = inlined_call_operand.vmem [shape: f32[4,3], index: 1, kind: output, shape index: {}]
  $region1: #{tile.28} parent=0
    #allocation0 [shape = 'u8[512]{0}', space=vmem, size = 0x400, scoped, tag = 'operand span for operand 0']
    #allocation1 [shape = 's32[1]{0}', space=sflag, size = 0x4, scoped, tag = 'scoped memory for tile.28']
    %2 = vsyncpa [#allocation1], 0
    // Predicated region
    $region2: #{tile.28} parent=1 // pred_check
      _
    $region3: #{tile.28} parent=1 // pred_check_branch
      %4 = sbr.rel (0) target = $region5
    $region4: #{tile.28} parent=1 // pred_region
      %s6 = ssub.s32 16, 16
      %7 = vsyncadd [#allocation1], %s6
      %s9 = sshll.u32 [#allocation0], 4
      %s10 = int_to_ptr.vmem [resolvable:$true] %s9
      %12 = dma.hbm_to_vmem [thread:$0]  %s0, 16, %s10, [#allocation1]
    $region5: #{tile.28} parent=1 // pred_fallthru
      _
    // Predicated region
    $region6: #{tile.28} parent=1 // pred_check
      _
    $region7: #{tile.28} parent=1 // pred_check_branch
      %14 = sbr.rel (0) target = $region9
    $region8: #{tile.28} parent=1 // pred_region
      %15 = dma.done [#allocation1], 16
    $region9: #{tile.28} parent=1 // pred_fallthru
      _
    %v16 = vld [vmem:[#allocation0] ss:$0 sm:$0xff]
    %17 = vst [vmem:[%s1] sm:$0xf] %v16
    %18 = vsyncpa [#allocation1], 1

// kernel: tile.29
$region0: #{tile.29}
  %s0 = inlined_call_operand.vmem [shape: f32[4,3], index: 0, kind: input, shape index: {}]
  %s1 = inlined_call_operand.vmem [shape: f32[12], index: 1, kind: output, shape index: {}]
  $region1: #{tile.29} parent=0
    #allocation0 [shape = 'u8[4096]{0}', space=vmem, size = 0x1000, scoped, tag = 'scoped mem for output reshape']
    #allocation1 [shape = 'u8[4096]{0}', space=vmem, size = 0x1000, scoped, tag = 'scoped mem for input reshape']
    %s3 = sshllo.u32 0, 4
    %v4 = vld [vmem:[%s0] sm:%s3]
    %5 = vst [vmem:[#allocation1] sm:%s3] %v4
    %v6 = vld [vmem:[#allocation1] sm:$0x1]
    %vm7 = vcmask 23552
    %8 = vst.msk [vmem:[#allocation0] sm:$0x1] %vm7, %v6
    %s9 = scalar_lea.vmem [#allocation1], 3
    %v10 = vld [vmem:[%s9] sm:$0x1]
    %11 = vrot.lane.b32.xlu0 %v10, 9
    %v12 = vpop.permute.xlu0 %11
    %vm13 = vcmask 97352
    %14 = vst.msk [vmem:[#allocation0] sm:$0x1] %vm13, %v12
    %s15 = scalar_lea.vmem [#allocation1], 2
    %v16 = vld [vmem:[%s15] sm:$0x1]
    %17 = vrot.lane.b32.xlu0 %v16, 6
    %v18 = vpop.permute.xlu0 %17
    %vm19 = vcmask 72752
    %20 = vst.msk [vmem:[#allocation0] sm:$0x1] %vm19, %v18
    %s21 = scalar_lea.vmem [#allocation1], 1
    %v22 = vld [vmem:[%s21] sm:$0x1]
    %23 = vrot.lane.b32.xlu0 %v22, 3
    %v24 = vpop.permute.xlu0 %23
    %vm25 = vcmask 48152
    %26 = vst.msk [vmem:[#allocation0] sm:$0x1] %vm25, %v24
    %s28 = sshllo.u32 0, 1
    %v30 = vld [vmem:[#allocation0] sm:%s28]
    %s31 = sshllo.u32 0, 1
    %32 = vst [vmem:[%s1] sm:%s31] %v30

// kernel: autoencoder_forward.5
$region0: #{autoencoder_forward.5}
  #allocation0 [shape = 'u32[]', space=smem, size = 0x4, offset = 0x4, fixed_abs, tag = 'smem constant byte address 0x4 - core index']
  #allocation1 [shape = 'u32[144,128]{1,0:T(1,128)}', space=vmem, size = 0x12000, scoped, tag = 'internal scratch']
  %s0 = inlined_call_operand.vmem [shape: bf16[512,48], index: 0, kind: input, shape index: {}]
  %s1 = inlined_call_operand.vmem [shape: bf16[48,128], index: 1, kind: input, shape index: {}]
  %s2 = inlined_call_operand.vmem [shape: f32[1,128], index: 2, kind: input, shape index: {}]
  %s3 = inlined_call_operand.vmem [shape: bf16[512,128], index: 3, kind: output, shape index: {}]
  %s4 = sld [smem:[#allocation0]]
  $region45: #{autoencoder_forward.5} parent=0
    _
  %s6 = ssub.s32 1, %s4
  %s7 = scalar_select 0, %s6, %s4
  loop: start=0, step=1, limit=4
  $region2: #{autoencoder_forward.5} parent=0 // loop_pre_header
    _
  $region3: #{autoencoder_forward.5} parent=0 // loop_header
    %s9 = sphi 0, %s13
    %p10 = scmp.ge.s32.totalorder %s9, 4
    %s19 = sphi 0, %s21
    %s22 = sphi 0, %s19
    %s23 = sphi 0, %s22
    %s39 = sphi 0, %s23
    %s43 = sphi 0, %s43
    %s45 = sphi 0, %s43
    %s46 = sphi 0, %s45
    %s60 = sphi 0, %s46
    %s64 = sphi 0, %s64
    %s66 = sphi 0, %s64
    %s67 = sphi 0, %s66
    %s81 = sphi 0, %s67
    %s87 = sphi 0, %s89
    %s90 = sphi 0, %s87
    %s91 = sphi 0, %s90
    %s107 = sphi 0, %s91
  $region4: #{autoencoder_forward.5} parent=0 // loop_header_branch
    %12 = sbr.rel (%p10) target = $region8
  $region5: #{autoencoder_forward.5} parent=0 // loop_body
    %s14 = ssub.s32 %s9, 1
    %s15 = ssub.s32 %s9, 2
    %s16 = sadd.s32 %s9, 1
    %s17 = ssub.s32 %s9, %s16
    %p18 = scmp.eq.s32.totalorder %s17, 0
    %s20 = sadd.s32 %s19, 1
    %s21 = scalar_select %p18, %s19, %s20
    %p24 = pneg %p18
    %p25 = scmp.eq.s32.totalorder %s9, 1
    %p26 = por %p24, %p25
    %p27 = scmp.ne.s32.totalorder %s19, %s22
    %p28 = scmp.eq.s32.totalorder %s9, 0
    %p29 = por %p27, %p28
    %p30 = scmp.ne.s32.totalorder %s19, %s22
    %p31 = scmp.eq.s32.totalorder %s14, 1
    %p32 = por %p30, %p31
    %p33 = scmp.ne.s32.totalorder %s22, %s23
    %p34 = scmp.eq.s32.totalorder %s14, 0
    %p35 = por %p33, %p34
    %p36 = scmp.ne.s32.totalorder %s22, %s23
    %p37 = scmp.eq.s32.totalorder %s15, 1
    %p38 = por %p36, %p37
    %p40 = scmp.ne.s32.totalorder %s23, %s39
    %p41 = scmp.eq.s32.totalorder %s15, 0
    %p42 = por %p40, %p41
    %s44 = sadd.s32 %s43, 1
    %p47 = scmp.eq.s32.totalorder %s9, 1
    %p48 = scmp.ne.s32.totalorder %s43, %s45
    %p49 = scmp.eq.s32.totalorder %s9, 0
    %p50 = por %p48, %p49
    %p51 = scmp.ne.s32.totalorder %s43, %s45
    %p52 = scmp.eq.s32.totalorder %s14, 1
    %p53 = por %p51, %p52
    %p54 = scmp.ne.s32.totalorder %s45, %s46
    %p55 = scmp.eq.s32.totalorder %s14, 0
    %p56 = por %p54, %p55
    %p57 = scmp.ne.s32.totalorder %s45, %s46
    %p58 = scmp.eq.s32.totalorder %s15, 1
    %p59 = por %p57, %p58
    %p61 = scmp.ne.s32.totalorder %s46, %s60
    %p62 = scmp.eq.s32.totalorder %s15, 0
    %p63 = por %p61, %p62
    %s65 = sadd.s32 %s64, 1
    %p68 = scmp.eq.s32.totalorder %s9, 1
    %p69 = scmp.ne.s32.totalorder %s64, %s66
    %p70 = scmp.eq.s32.totalorder %s9, 0
    %p71 = por %p69, %p70
    %p72 = scmp.ne.s32.totalorder %s64, %s66
    %p73 = scmp.eq.s32.totalorder %s14, 1
    %p74 = por %p72, %p73
    %p75 = scmp.ne.s32.totalorder %s66, %s67
    %p76 = scmp.eq.s32.totalorder %s14, 0
    %p77 = por %p75, %p76
    %p78 = scmp.ne.s32.totalorder %s66, %s67
    %p79 = scmp.eq.s32.totalorder %s15, 1
    %p80 = por %p78, %p79
    %p82 = scmp.ne.s32.totalorder %s67, %s81
    %p83 = scmp.eq.s32.totalorder %s15, 0
    %p84 = por %p82, %p83
    %s85 = ssub.s32 %s9, %s16
    %p86 = scmp.eq.s32.totalorder %s85, 0
    %s88 = sadd.s32 %s87, 1
    %s89 = scalar_select %p86, %s87, %s88
    %p92 = pneg %p86
    %p93 = scmp.eq.s32.totalorder %s9, 1
    %p94 = por %p92, %p93
    %p95 = scmp.ne.s32.totalorder %s87, %s90
    %p96 = scmp.eq.s32.totalorder %s9, 0
    %p97 = por %p95, %p96
    %p98 = scmp.ne.s32.totalorder %s87, %s90
    %p99 = scmp.eq.s32.totalorder %s14, 1
    %p100 = por %p98, %p99
    %p101 = scmp.ne.s32.totalorder %s90, %s91
    %p102 = scmp.eq.s32.totalorder %s14, 0
    %p103 = por %p101, %p102
    %p104 = scmp.ne.s32.totalorder %s90, %s91
    %p105 = scmp.eq.s32.totalorder %s15, 1
    %p106 = por %p104, %p105
    %p108 = scmp.ne.s32.totalorder %s91, %s107
    %p109 = scmp.eq.s32.totalorder %s15, 0
    %p110 = por %p108, %p109
    %p111 = scmp.le.s32.totalorder 1, %s9
    %p112 = scmp.lt.s32.totalorder %s9, 3
    %p113 = pnand %p111, %p112
    %p114 = pneg %p113
    // Predicated region
    $region9: #{autoencoder_forward.5} parent=5 // pred_check
      _
    $region10: #{autoencoder_forward.5} parent=5 // pred_check_branch
      %116 = sbr.rel (%p113) target = $region12
    $region11: #{autoencoder_forward.5} parent=5 // pred_region
      %s117 = ssub.s32 %s9, 1
      // Predicated region
      $region13: #{autoencoder_forward.5} parent=11 // pred_check
        %p118 = pneg %p56
      $region14: #{autoencoder_forward.5} parent=11 // pred_check_branch
        %120 = sbr.rel (%p118) target = $region16
      $region15: #{autoencoder_forward.5} parent=11 // pred_region
        _
      $region16: #{autoencoder_forward.5} parent=11 // pred_fallthru
        _
      // Predicated region
      $region17: #{autoencoder_forward.5} parent=11 // pred_check
        %p121 = pneg %p77
      $region18: #{autoencoder_forward.5} parent=11 // pred_check_branch
        %123 = sbr.rel (%p121) target = $region20
      $region19: #{autoencoder_forward.5} parent=11 // pred_region
        _
      $region20: #{autoencoder_forward.5} parent=11 // pred_fallthru
        _
    $region12: #{autoencoder_forward.5} parent=5 // pred_fallthru
      _
    %p124 = scmp.lt.s32.totalorder %s9, 2
    // Predicated region
    $region21: #{autoencoder_forward.5} parent=5 // pred_check
      %p125 = pneg %p124
    $region22: #{autoencoder_forward.5} parent=5 // pred_check_branch
      %127 = sbr.rel (%p125) target = $region24
    $region23: #{autoencoder_forward.5} parent=5 // pred_region
      // Predicated region
      $region25: #{autoencoder_forward.5} parent=23 // pred_check
        %p128 = pneg %p29
      $region26: #{autoencoder_forward.5} parent=23 // pred_check_branch
        %130 = sbr.rel (%p128) target = $region28
      $region27: #{autoencoder_forward.5} parent=23 // pred_region
        %s131 = smul.u32 32, %s9
        %p132 = scmp.lt.s32.totalorder %s131, 63
        %s133 = scalar_select %p132, %s131, 63
        %s134 = smul.addr %s133, 4
        %s135 = scalar_lea.vmem %s0, %s134
        %s136 = smul.u32 32, %s9
      $region28: #{autoencoder_forward.5} parent=23 // pred_fallthru
        _
    $region24: #{autoencoder_forward.5} parent=5 // pred_fallthru
      _
    %p137 = scmp.le.s32.totalorder 1, %s9
    %p138 = scmp.lt.s32.totalorder %s9, 3
    %p139 = pnand %p137, %p138
    %p140 = pneg %p139
    // Predicated region
    $region29: #{autoencoder_forward.5} parent=5 // pred_check
      _
    $region30: #{autoencoder_forward.5} parent=5 // pred_check_branch
      %142 = sbr.rel (%p139) target = $region32
    $region31: #{autoencoder_forward.5} parent=5 // pred_region
      %s143 = ssub.s32 %s9, 1
      %s144 = smul.u32 32, %s14
      %p145 = scmp.lt.s32.totalorder %s144, 63
      %s146 = scalar_select %p145, %s144, 63
      %s147 = smul.addr %s146, 4
      %s148 = scalar_lea.vmem %s0, %s147
      %p149 = pneg %p35
      %p150 = pneg %p32
      %p151 = pneg %p56
      %p152 = pneg %p53
      %p153 = pneg %p77
      %p154 = pneg %p74
      %p155 = pneg %p103
      %p156 = pneg %p100
      %s157 = smul.u32 32, %s14
      %p158 = scmp.lt.s32.totalorder %s157, 63
      %s159 = scalar_select %p158, %s157, 63
      %s160 = smul.addr %s159, 4
      %s161 = scalar_lea.vmem %s3, %s160
      %s162 = smul.u32 32, %s14
      %p163 = scmp.lt.s32.totalorder %s162, 63
      %s164 = scalar_select %p163, %s162, 63
      %s165 = smul.addr %s164, 4
      %s166 = scalar_lea.vmem %s0, %s165
      %s167 = smul.u32 32, %s14
      %s168 = smul.u32 32, %s14
      %p169 = scmp.lt.s32.totalorder %s168, 63
      %s170 = scalar_select %p169, %s168, 63
      %s171 = smul.addr %s170, 4
      %s172 = scalar_lea.vmem %s3, %s171
      %s173 = smul.u32 32, %s14
      %v175 = vld [vmem:[%s166] sm:$0xf]
      %v176 = vld [vmem:[%s166 + $0x4] sm:$0xf]
      %v177 = vld [vmem:[%s166 + $0x8] sm:$0xf]
      %v178 = vld [vmem:[%s166 + $0xc] sm:$0xf]
      %v179 = vld [vmem:[%s166 + $0x10] sm:$0xf]
      %v180 = vld [vmem:[%s166 + $0x14] sm:$0xf]
      %v181 = vld [vmem:[%s166 + $0x18] sm:$0xf]
      %v182 = vld [vmem:[%s166 + $0x1c] sm:$0xf]
      %v183 = vld [vmem:[%s166 + $0x20] sm:$0xf]
      %v184 = vld [vmem:[%s166 + $0x24] sm:$0xf]
      %v185 = vld [vmem:[%s166 + $0x28] sm:$0xf]
      %v186 = vld [vmem:[%s166 + $0x2c] sm:$0xf]
      %v187 = vld [vmem:[%s166 + $0x30] sm:$0xf]
      %v188 = vld [vmem:[%s166 + $0x34] sm:$0xf]
      %v189 = vld [vmem:[%s166 + $0x38] sm:$0xf]
      %v190 = vld [vmem:[%s166 + $0x3c] sm:$0xf]
      %v191 = vld [vmem:[%s166 + $0x40] sm:$0xf]
      %v192 = vld [vmem:[%s166 + $0x44] sm:$0xf]
      %v193 = vld [vmem:[%s166 + $0x48] sm:$0xf]
      %v194 = vld [vmem:[%s166 + $0x4c] sm:$0xf]
      %v195 = vld [vmem:[%s166 + $0x50] sm:$0xf]
      %v196 = vld [vmem:[%s166 + $0x54] sm:$0xf]
      %v197 = vld [vmem:[%s166 + $0x58] sm:$0xf]
      %v198 = vld [vmem:[%s166 + $0x5c] sm:$0xf]
      %v199 = vld [vmem:[%s166 + $0x60] sm:$0xf]
      %v200 = vld [vmem:[%s166 + $0x64] sm:$0xf]
      %v201 = vld [vmem:[%s166 + $0x68] sm:$0xf]
      %v202 = vld [vmem:[%s166 + $0x6c] sm:$0xf]
      %v203 = vld [vmem:[%s166 + $0x70] sm:$0xf]
      %v204 = vld [vmem:[%s166 + $0x74] sm:$0xf]
      %v205 = vld [vmem:[%s166 + $0x78] sm:$0xf]
      %v206 = vld [vmem:[%s166 + $0x7c] sm:$0xf]
      %v207 = vld [vmem:[%s1] sm:$0xf]
      %v208 = vld [vmem:[%s1 + $0x4] sm:$0xf]
      %v209 = vld [vmem:[%s1 + $0x8] sm:$0xf]
      %v210 = vld [vmem:[%s1 + $0xc] sm:$0xf]
      %v211 = vld [vmem:[%s1 + $0x10] sm:$0xf]
      %v212 = vld [vmem:[%s1 + $0x14] sm:$0xf]
      %v213 = vld [vmem:[%s2] sm:$0x1]
      %v215 = vlaneseq
      %v216 = vshrl.u32 %v215, 7
      %v217 = vsub.s32 0, %v216
      %v218 = vrot.slane %v213, %v217
      %v252 = vunpack.c.l.b16 %v175
      %v253 = vunpack.c.l.b16 %v176
      %v254 = vunpack.c.l.b16 %v177
      %v255 = vunpack.c.l.b16 %v178
      %v256 = vunpack.c.l.b16 %v179
      %v257 = vunpack.c.l.b16 %v180
      %v258 = vunpack.c.l.b16 %v181
      %v259 = vunpack.c.l.b16 %v182
      %v260 = vunpack.c.l.b16 %v183
      %v261 = vunpack.c.l.b16 %v184
      %v262 = vunpack.c.l.b16 %v185
      %v263 = vunpack.c.l.b16 %v186
      %v264 = vunpack.c.l.b16 %v187
      %v265 = vunpack.c.l.b16 %v188
      %v266 = vunpack.c.l.b16 %v189
      %v267 = vunpack.c.l.b16 %v190
      %v268 = vunpack.c.l.b16 %v191
      %v269 = vunpack.c.l.b16 %v192
      %v270 = vunpack.c.l.b16 %v193
      %v271 = vunpack.c.l.b16 %v194
      %v272 = vunpack.c.l.b16 %v195
      %v273 = vunpack.c.l.b16 %v196
      %v274 = vunpack.c.l.b16 %v197
      %v275 = vunpack.c.l.b16 %v198
      %v276 = vunpack.c.l.b16 %v199
      %v277 = vunpack.c.l.b16 %v200
      %v278 = vunpack.c.l.b16 %v201
      %v279 = vunpack.c.l.b16 %v202
      %v280 = vunpack.c.l.b16 %v203
      %v281 = vunpack.c.l.b16 %v204
      %v282 = vunpack.c.l.b16 %v205
      %v283 = vunpack.c.l.b16 %v206
      %v284 = vpack.c.b16 %v253, %v252
      %v285 = vpack.c.b16 %v255, %v254
      %v286 = vpack.c.b16 %v257, %v256
      %v287 = vpack.c.b16 %v259, %v258
      %v288 = vpack.c.b16 %v261, %v260
      %v289 = vpack.c.b16 %v263, %v262
      %v290 = vpack.c.b16 %v265, %v264
      %v291 = vpack.c.b16 %v267, %v266
      %v292 = vpack.c.b16 %v269, %v268
      %v293 = vpack.c.b16 %v271, %v270
      %v294 = vpack.c.b16 %v273, %v272
      %v295 = vpack.c.b16 %v275, %v274
      %v296 = vpack.c.b16 %v277, %v276
      %v297 = vpack.c.b16 %v279, %v278
      %v298 = vpack.c.b16 %v281, %v280
      %v299 = vpack.c.b16 %v283, %v282
      %v306 = vunpack.c.l.b16 %v207
      %v307 = vunpack.c.l.b16 %v208
      %v308 = vunpack.c.l.b16 %v209
      %v309 = vunpack.c.l.b16 %v210
      %v310 = vunpack.c.l.b16 %v211
      %v311 = vunpack.c.l.b16 %v212
      %v312 = vpack.c.b16 %v307, %v306
      %v313 = vpack.c.b16 %v309, %v308
      %v314 = vpack.c.b16 %v311, %v310
      %vm318 = vcmask 392192
      %v320 = vsel %vm318, %v284, 0
      %v323 = vsel %vm318, %v285, 0
      %v326 = vsel %vm318, %v286, 0
      %v329 = vsel %vm318, %v287, 0
      %v332 = vsel %vm318, %v288, 0
      %v335 = vsel %vm318, %v289, 0
      %v338 = vsel %vm318, %v290, 0
      %v341 = vsel %vm318, %v291, 0
      %v344 = vsel %vm318, %v292, 0
      %v347 = vsel %vm318, %v293, 0
      %v350 = vsel %vm318, %v294, 0
      %v353 = vsel %vm318, %v295, 0
      %v356 = vsel %vm318, %v296, 0
      %v359 = vsel %vm318, %v297, 0
      %v362 = vsel %vm318, %v298, 0
      %v365 = vsel %vm318, %v299, 0
      %367 = vmatprep.subr.bf16.mxu0 0
      %368 = vmatpush1.bf16.msra.mxu0 %v312
      %369 = vmatprep.subr.bf16.mxu0 0
      %370 = vmatpush1.bf16.msra.mxu0 %v313
      %371 = vmatprep.subr.bf16.mxu0 0
      %372 = vmatpush1.bf16.msra.mxu0 %v314
      %373 = vmatprep.subr.bf16.mxu0 0
      %374 = vmatpush1.bf16.msra.mxu0 0
      %375 = vmatprep.subr.bf16.mxu0 0
      %376 = vmatpush1.bf16.msra.mxu0 0
      %377 = vmatprep.subr.bf16.mxu0 0
      %378 = vmatpush1.bf16.msra.mxu0 0
      %379 = vmatprep.subr.bf16.mxu0 0
      %380 = vmatpush1.bf16.msra.mxu0 0
      %381 = vmatprep.subr.bf16.mxu0 0
      %382 = vmatpush1.bf16.msra.mxu0 0
      %383 = vmatprep.subr.bf16.mxu0 0
      %384 = vmatpush1.bf16.msra.mxu0 0
      %385 = vmatprep.subr.bf16.mxu0 0
      %386 = vmatpush1.bf16.msra.mxu0 0
      %387 = vmatprep.subr.bf16.mxu0 0
      %388 = vmatpush1.bf16.msra.mxu0 0
      %389 = vmatprep.subr.bf16.mxu0 0
      %390 = vmatpush1.bf16.msra.mxu0 0
      %391 = vmatprep.subr.bf16.mxu0 0
      %392 = vmatpush1.bf16.msra.mxu0 0
      %393 = vmatprep.subr.bf16.mxu0 0
      %394 = vmatpush1.bf16.msra.mxu0 0
      %395 = vmatprep.subr.bf16.mxu0 0
      %396 = vmatpush1.bf16.msra.mxu0 0
      %397 = vmatprep.subr.bf16.mxu0 0
      %398 = vmatpush1.bf16.msra.mxu0 0
      %399 = vmatprep.mubr.bf16.mxu0 0
      %400 = vmatmul.mubr.bf16.gmra.mrb[0].mxu0 %v320
      %v401 = vpop.f32.mrb[0].mxu0
      %v402 = vadd.f32 %v218, %v401
      %v403 = vpop.f32.mrb[0].mxu0
      %v404 = vpop.f32.mrb[0].mxu0
      %v405 = vadd.f32 %v218, %v404
      %v406 = vpop.f32.mrb[0].mxu0
      %407 = vmatprep.mubr.bf16.mxu0 0
      %408 = vmatmul.mubr.bf16.gmra.mrb[0].mxu0 %v323
      %v409 = vpop.f32.mrb[0].mxu0
      %v410 = vadd.f32 %v218, %v409
      %v411 = vpop.f32.mrb[0].mxu0
      %v412 = vpop.f32.mrb[0].mxu0
      %v413 = vadd.f32 %v218, %v412
      %v414 = vpop.f32.mrb[0].mxu0
      %415 = vmatprep.mubr.bf16.mxu0 0
      %416 = vmatmul.mubr.bf16.gmra.mrb[0].mxu0 %v326
      %v417 = vpop.f32.mrb[0].mxu0
      %v418 = vadd.f32 %v218, %v417
      %v419 = vpop.f32.mrb[0].mxu0
      %v420 = vpop.f32.mrb[0].mxu0
      %v421 = vadd.f32 %v218, %v420
      %v422 = vpop.f32.mrb[0].mxu0
      %423 = vmatprep.mubr.bf16.mxu0 0
      %424 = vmatmul.mubr.bf16.gmra.mrb[0].mxu0 %v329
      %v425 = vpop.f32.mrb[0].mxu0
      %v426 = vadd.f32 %v218, %v425
      %v427 = vpop.f32.mrb[0].mxu0
      %v428 = vpop.f32.mrb[0].mxu0
      %v429 = vadd.f32 %v218, %v428
      %v430 = vpop.f32.mrb[0].mxu0
      %431 = vmatprep.mubr.bf16.mxu0 0
      %432 = vmatmul.mubr.bf16.gmra.mrb[0].mxu0 %v332
      %v433 = vpop.f32.mrb[0].mxu0
      %v434 = vadd.f32 %v218, %v433
      %v435 = vpop.f32.mrb[0].mxu0
      %v436 = vpop.f32.mrb[0].mxu0
      %v437 = vadd.f32 %v218, %v436
      %v438 = vpop.f32.mrb[0].mxu0
      %439 = vmatprep.mubr.bf16.mxu0 0
      %440 = vmatmul.mubr.bf16.gmra.mrb[0].mxu0 %v335
      %v441 = vpop.f32.mrb[0].mxu0
      %v442 = vadd.f32 %v218, %v441
      %v443 = vpop.f32.mrb[0].mxu0
      %v444 = vpop.f32.mrb[0].mxu0
      %v445 = vadd.f32 %v218, %v444
      %v446 = vpop.f32.mrb[0].mxu0
      %447 = vmatprep.mubr.bf16.mxu0 0
      %448 = vmatmul.mubr.bf16.gmra.mrb[0].mxu0 %v338
      %v449 = vpop.f32.mrb[0].mxu0
      %v450 = vadd.f32 %v218, %v449
      %v451 = vpop.f32.mrb[0].mxu0
      %v452 = vpop.f32.mrb[0].mxu0
      %v453 = vadd.f32 %v218, %v452
      %v454 = vpop.f32.mrb[0].mxu0
      %455 = vmatprep.mubr.bf16.mxu0 0
      %456 = vmatmul.mubr.bf16.gmra.mrb[0].mxu0 %v341
      %v457 = vpop.f32.mrb[0].mxu0
      %v458 = vadd.f32 %v218, %v457
      %v459 = vpop.f32.mrb[0].mxu0
      %v460 = vpop.f32.mrb[0].mxu0
      %v461 = vadd.f32 %v218, %v460
      %v462 = vpop.f32.mrb[0].mxu0
      %463 = vmatprep.mubr.bf16.mxu0 0
      %464 = vmatmul.mubr.bf16.gmra.mrb[0].mxu0 %v344
      %v465 = vpop.f32.mrb[0].mxu0
      %v466 = vadd.f32 %v218, %v465
      %v467 = vpop.f32.mrb[0].mxu0
      %v468 = vpop.f32.mrb[0].mxu0
      %v469 = vadd.f32 %v218, %v468
      %v470 = vpop.f32.mrb[0].mxu0
      %471 = vmatprep.mubr.bf16.mxu0 0
      %472 = vmatmul.mubr.bf16.gmra.mrb[0].mxu0 %v347
      %v473 = vpop.f32.mrb[0].mxu0
      %v474 = vadd.f32 %v218, %v473
      %v475 = vpop.f32.mrb[0].mxu0
      %v476 = vpop.f32.mrb[0].mxu0
      %v477 = vadd.f32 %v218, %v476
      %v478 = vpop.f32.mrb[0].mxu0
      %479 = vmatprep.mubr.bf16.mxu0 0
      %480 = vmatmul.mubr.bf16.gmra.mrb[0].mxu0 %v350
      %v481 = vpop.f32.mrb[0].mxu0
      %v482 = vadd.f32 %v218, %v481
      %v483 = vpop.f32.mrb[0].mxu0
      %v484 = vpop.f32.mrb[0].mxu0
      %v485 = vadd.f32 %v218, %v484
      %v486 = vpop.f32.mrb[0].mxu0
      %487 = vmatprep.mubr.bf16.mxu0 0
      %488 = vmatmul.mubr.bf16.gmra.mrb[0].mxu0 %v353
      %v489 = vpop.f32.mrb[0].mxu0
      %v490 = vadd.f32 %v218, %v489
      %v491 = vpop.f32.mrb[0].mxu0
      %v492 = vpop.f32.mrb[0].mxu0
      %v493 = vadd.f32 %v218, %v492
      %v494 = vpop.f32.mrb[0].mxu0
      %495 = vmatprep.mubr.bf16.mxu0 0
      %496 = vmatmul.mubr.bf16.gmra.mrb[0].mxu0 %v356
      %v497 = vpop.f32.mrb[0].mxu0
      %v498 = vadd.f32 %v218, %v497
      %v499 = vpop.f32.mrb[0].mxu0
      %v500 = vpop.f32.mrb[0].mxu0
      %v501 = vadd.f32 %v218, %v500
      %v502 = vpop.f32.mrb[0].mxu0
      %503 = vmatprep.mubr.bf16.mxu0 0
      %504 = vmatmul.mubr.bf16.gmra.mrb[0].mxu0 %v359
      %v505 = vpop.f32.mrb[0].mxu0
      %v506 = vadd.f32 %v218, %v505
      %v507 = vpop.f32.mrb[0].mxu0
      %v508 = vpop.f32.mrb[0].mxu0
      %v509 = vadd.f32 %v218, %v508
      %v510 = vpop.f32.mrb[0].mxu0
      %511 = vmatprep.mubr.bf16.mxu0 0
      %512 = vmatmul.mubr.bf16.gmra.mrb[0].mxu0 %v362
      %v513 = vpop.f32.mrb[0].mxu0
      %v514 = vadd.f32 %v218, %v513
      %v515 = vpop.f32.mrb[0].mxu0
      %v516 = vpop.f32.mrb[0].mxu0
      %v517 = vadd.f32 %v218, %v516
      %v518 = vpop.f32.mrb[0].mxu0
      %519 = vmatprep.mubr.bf16.mxu0 0
      %520 = vmatmul.mubr.bf16.gmra.mrb[0].mxu0 %v365
      %v521 = vpop.f32.mrb[0].mxu0
      %v522 = vadd.f32 %v218, %v521
      %v523 = vpop.f32.mrb[0].mxu0
      %v524 = vpop.f32.mrb[0].mxu0
      %v525 = vadd.f32 %v218, %v524
      %v526 = vpop.f32.mrb[0].mxu0
      %527 = vdwg.mxu0
      %v528 = vmax.f32 %v402, 0.0
      %v529 = vmax.f32 %v405, 0.0
      %v530 = vmax.f32 %v410, 0.0
      %v531 = vmax.f32 %v413, 0.0
      %v532 = vmax.f32 %v418, 0.0
      %v533 = vmax.f32 %v421, 0.0
      %v534 = vmax.f32 %v426, 0.0
      %v535 = vmax.f32 %v429, 0.0
      %v536 = vmax.f32 %v434, 0.0
      %v537 = vmax.f32 %v437, 0.0
      %v538 = vmax.f32 %v442, 0.0
      %v539 = vmax.f32 %v445, 0.0
      %v540 = vmax.f32 %v450, 0.0
      %v541 = vmax.f32 %v453, 0.0
      %v542 = vmax.f32 %v458, 0.0
      %v543 = vmax.f32 %v461, 0.0
      %v544 = vmax.f32 %v466, 0.0
      %v545 = vmax.f32 %v469, 0.0
      %v546 = vmax.f32 %v474, 0.0
      %v547 = vmax.f32 %v477, 0.0
      %v548 = vmax.f32 %v482, 0.0
      %v549 = vmax.f32 %v485, 0.0
      %v550 = vmax.f32 %v490, 0.0
      %v551 = vmax.f32 %v493, 0.0
      %v552 = vmax.f32 %v498, 0.0
      %v553 = vmax.f32 %v501, 0.0
      %v554 = vmax.f32 %v506, 0.0
      %v555 = vmax.f32 %v509, 0.0
      %v556 = vmax.f32 %v514, 0.0
      %v557 = vmax.f32 %v517, 0.0
      %v558 = vmax.f32 %v522, 0.0
      %v559 = vmax.f32 %v525, 0.0
      %v560 = vpack.c.bf16 %v529, %v528
      %v561 = vpack.c.bf16 %v531, %v530
      %v562 = vpack.c.bf16 %v533, %v532
      %v563 = vpack.c.bf16 %v535, %v534
      %v564 = vpack.c.bf16 %v537, %v536
      %v565 = vpack.c.bf16 %v539, %v538
      %v566 = vpack.c.bf16 %v541, %v540
      %v567 = vpack.c.bf16 %v543, %v542
      %v568 = vpack.c.bf16 %v545, %v544
      %v569 = vpack.c.bf16 %v547, %v546
      %v570 = vpack.c.bf16 %v549, %v548
      %v571 = vpack.c.bf16 %v551, %v550
      %v572 = vpack.c.bf16 %v553, %v552
      %v573 = vpack.c.bf16 %v555, %v554
      %v574 = vpack.c.bf16 %v557, %v556
      %v575 = vpack.c.bf16 %v559, %v558
      %v592 = vunpack.c.l.b16 %v560
      %v593 = vunpack.c.h.b16 %v560
      %v594 = vunpack.c.l.b16 %v561
      %v595 = vunpack.c.h.b16 %v561
      %v596 = vunpack.c.l.b16 %v562
      %v597 = vunpack.c.h.b16 %v562
      %v598 = vunpack.c.l.b16 %v563
      %v599 = vunpack.c.h.b16 %v563
      %v600 = vunpack.c.l.b16 %v564
      %v601 = vunpack.c.h.b16 %v564
      %v602 = vunpack.c.l.b16 %v565
      %v603 = vunpack.c.h.b16 %v565
      %v604 = vunpack.c.l.b16 %v566
      %v605 = vunpack.c.h.b16 %v566
      %v606 = vunpack.c.l.b16 %v567
      %v607 = vunpack.c.h.b16 %v567
      %v608 = vunpack.c.l.b16 %v568
      %v609 = vunpack.c.h.b16 %v568
      %v610 = vunpack.c.l.b16 %v569
      %v611 = vunpack.c.h.b16 %v569
      %v612 = vunpack.c.l.b16 %v570
      %v613 = vunpack.c.h.b16 %v570
      %v614 = vunpack.c.l.b16 %v571
      %v615 = vunpack.c.h.b16 %v571
      %v616 = vunpack.c.l.b16 %v572
      %v617 = vunpack.c.h.b16 %v572
      %v618 = vunpack.c.l.b16 %v573
      %v619 = vunpack.c.h.b16 %v573
      %v620 = vunpack.c.l.b16 %v574
      %v621 = vunpack.c.h.b16 %v574
      %v622 = vunpack.c.l.b16 %v575
      %v623 = vunpack.c.h.b16 %v575
      %v624 = vpack.c.b16 %v592, %v592
      %v625 = vpack.c.b16 %v593, %v593
      %v626 = vpack.c.b16 %v594, %v594
      %v627 = vpack.c.b16 %v595, %v595
      %v628 = vpack.c.b16 %v596, %v596
      %v629 = vpack.c.b16 %v597, %v597
      %v630 = vpack.c.b16 %v598, %v598
      %v631 = vpack.c.b16 %v599, %v599
      %v632 = vpack.c.b16 %v600, %v600
      %v633 = vpack.c.b16 %v601, %v601
      %v634 = vpack.c.b16 %v602, %v602
      %v635 = vpack.c.b16 %v603, %v603
      %v636 = vpack.c.b16 %v604, %v604
      %v637 = vpack.c.b16 %v605, %v605
      %v638 = vpack.c.b16 %v606, %v606
      %v639 = vpack.c.b16 %v607, %v607
      %v640 = vpack.c.b16 %v608, %v608
      %v641 = vpack.c.b16 %v609, %v609
      %v642 = vpack.c.b16 %v610, %v610
      %v643 = vpack.c.b16 %v611, %v611
      %v644 = vpack.c.b16 %v612, %v612
      %v645 = vpack.c.b16 %v613, %v613
      %v646 = vpack.c.b16 %v614, %v614
      %v647 = vpack.c.b16 %v615, %v615
      %v648 = vpack.c.b16 %v616, %v616
      %v649 = vpack.c.b16 %v617, %v617
      %v650 = vpack.c.b16 %v618, %v618
      %v651 = vpack.c.b16 %v619, %v619
      %v652 = vpack.c.b16 %v620, %v620
      %v653 = vpack.c.b16 %v621, %v621
      %v654 = vpack.c.b16 %v622, %v622
      %v655 = vpack.c.b16 %v623, %v623
      %688 = vst [vmem:[%s172] sm:$0xf] %v624
      %689 = vst [vmem:[%s172 + $0x4] sm:$0xf] %v625
      %690 = vst [vmem:[%s172 + $0x8] sm:$0xf] %v626
      %691 = vst [vmem:[%s172 + $0xc] sm:$0xf] %v627
      %692 = vst [vmem:[%s172 + $0x10] sm:$0xf] %v628
      %693 = vst [vmem:[%s172 + $0x14] sm:$0xf] %v629
      %694 = vst [vmem:[%s172 + $0x18] sm:$0xf] %v630
      %695 = vst [vmem:[%s172 + $0x1c] sm:$0xf] %v631
      %696 = vst [vmem:[%s172 + $0x20] sm:$0xf] %v632
      %697 = vst [vmem:[%s172 + $0x24] sm:$0xf] %v633
      %698 = vst [vmem:[%s172 + $0x28] sm:$0xf] %v634
      %699 = vst [vmem:[%s172 + $0x2c] sm:$0xf] %v635
      %700 = vst [vmem:[%s172 + $0x30] sm:$0xf] %v636
      %701 = vst [vmem:[%s172 + $0x34] sm:$0xf] %v637
      %702 = vst [vmem:[%s172 + $0x38] sm:$0xf] %v638
      %703 = vst [vmem:[%s172 + $0x3c] sm:$0xf] %v639
      %704 = vst [vmem:[%s172 + $0x40] sm:$0xf] %v640
      %705 = vst [vmem:[%s172 + $0x44] sm:$0xf] %v641
      %706 = vst [vmem:[%s172 + $0x48] sm:$0xf] %v642
      %707 = vst [vmem:[%s172 + $0x4c] sm:$0xf] %v643
      %708 = vst [vmem:[%s172 + $0x50] sm:$0xf] %v644
      %709 = vst [vmem:[%s172 + $0x54] sm:$0xf] %v645
      %710 = vst [vmem:[%s172 + $0x58] sm:$0xf] %v646
      %711 = vst [vmem:[%s172 + $0x5c] sm:$0xf] %v647
      %712 = vst [vmem:[%s172 + $0x60] sm:$0xf] %v648
      %713 = vst [vmem:[%s172 + $0x64] sm:$0xf] %v649
      %714 = vst [vmem:[%s172 + $0x68] sm:$0xf] %v650
      %715 = vst [vmem:[%s172 + $0x6c] sm:$0xf] %v651
      %716 = vst [vmem:[%s172 + $0x70] sm:$0xf] %v652
      %717 = vst [vmem:[%s172 + $0x74] sm:$0xf] %v653
      %718 = vst [vmem:[%s172 + $0x78] sm:$0xf] %v654
      %719 = vst [vmem:[%s172 + $0x7c] sm:$0xf] %v655
      %s720 = smul.u32 32, %s14
      %p721 = scmp.lt.s32.totalorder %s720, 63
      %s722 = scalar_select %p721, %s720, 63
      %s723 = smul.addr %s722, 4
      %s724 = scalar_lea.vmem %s3, %s723
      // Predicated region
      $region33: #{autoencoder_forward.5} parent=31 // pred_check
        %p725 = pneg %p100
      $region34: #{autoencoder_forward.5} parent=31 // pred_check_branch
        %727 = sbr.rel (%p725) target = $region36
      $region35: #{autoencoder_forward.5} parent=31 // pred_region
        %s728 = smul.u32 32, %s14
      $region36: #{autoencoder_forward.5} parent=31 // pred_fallthru
        _
    $region32: #{autoencoder_forward.5} parent=5 // pred_fallthru
      _
    %p729 = scmp.le.s32.totalorder 2, %s9
    // Predicated region
    $region37: #{autoencoder_forward.5} parent=5 // pred_check
      %p730 = pneg %p729
    $region38: #{autoencoder_forward.5} parent=5 // pred_check_branch
      %732 = sbr.rel (%p730) target = $region40
    $region39: #{autoencoder_forward.5} parent=5 // pred_region
      %s733 = ssub.s32 %s9, 2
      // Predicated region
      $region41: #{autoencoder_forward.5} parent=39 // pred_check
        %p734 = pneg %p106
      $region42: #{autoencoder_forward.5} parent=39 // pred_check_branch
        %736 = sbr.rel (%p734) target = $region44
      $region43: #{autoencoder_forward.5} parent=39 // pred_region
        %s737 = smul.u32 32, %s15
        %p738 = scmp.lt.s32.totalorder %s737, 63
        %s739 = scalar_select %p738, %s737, 63
        %s740 = smul.addr %s739, 4
        %s741 = scalar_lea.vmem %s3, %s740
      $region44: #{autoencoder_forward.5} parent=39 // pred_fallthru
        _
    $region40: #{autoencoder_forward.5} parent=5 // pred_fallthru
      _
  $region6: #{autoencoder_forward.5} parent=0 // loop_footer
    %s13 = sadd.s32 1, %s9
  $region7: #{autoencoder_forward.5} parent=0 // loop_footer_branch
    %8 = sbr.rel target = $region3
  $region8: #{autoencoder_forward.5} parent=0 // loop_exit
    _

// kernel: autoencoder_forward.6
$region0: #{autoencoder_forward.6}
  #allocation0 [shape = 'u32[]', space=smem, size = 0x4, offset = 0x4, fixed_abs, tag = 'smem constant byte address 0x4 - core index']
  #allocation1 [shape = 'u32[144,128]{1,0:T(1,128)}', space=vmem, size = 0x12000, scoped, tag = 'internal scratch']
  %s0 = inlined_call_operand.vmem [shape: bf16[32,256], index: 0, kind: input, shape index: {}]
  %s1 = inlined_call_operand.vmem [shape: bf16[256,128], index: 1, kind: input, shape index: {}]
  %s2 = inlined_call_operand.vmem [shape: f32[1,128], index: 2, kind: input, shape index: {}]
  %s3 = inlined_call_operand.vmem [shape: bf16[32,128], index: 3, kind: output, shape index: {}]
  %s4 = sld [smem:[#allocation0]]
  $region22: #{autoencoder_forward.6} parent=0
    _
  %s6 = ssub.s32 1, %s4
  %s7 = scalar_select 0, %s6, %s4
  // Predicated region
  $region2: #{autoencoder_forward.6} parent=0 // pred_check
    _
  $region3: #{autoencoder_forward.6} parent=0 // pred_check_branch
    %9 = sbr.rel (0) target = $region5
  $region4: #{autoencoder_forward.6} parent=0 // pred_region
    _
  $region5: #{autoencoder_forward.6} parent=0 // pred_fallthru
    _
  // Predicated region
  $region6: #{autoencoder_forward.6} parent=0 // pred_check
    _
  $region7: #{autoencoder_forward.6} parent=0 // pred_check_branch
    %11 = sbr.rel (0) target = $region9
  $region8: #{autoencoder_forward.6} parent=0 // pred_region
    _
  $region9: #{autoencoder_forward.6} parent=0 // pred_fallthru
    _
  // Predicated region
  $region10: #{autoencoder_forward.6} parent=0 // pred_check
    _
  $region11: #{autoencoder_forward.6} parent=0 // pred_check_branch
    %13 = sbr.rel (0) target = $region13
  $region12: #{autoencoder_forward.6} parent=0 // pred_region
    _
  $region13: #{autoencoder_forward.6} parent=0 // pred_fallthru
    _
  %v15 = vld [vmem:[%s0] sm:$0xff]
  %v16 = vld [vmem:[%s0 + $0x8] sm:$0xff]
  %v17 = vld [vmem:[%s0 + $0x10] sm:$0xff]
  %v18 = vld [vmem:[%s0 + $0x18] sm:$0xff]
  %v19 = vld [vmem:[%s1] sm:$0xf]
  %v20 = vld [vmem:[%s1 + $0x4] sm:$0xf]
  %v21 = vld [vmem:[%s1 + $0x8] sm:$0xf]
  %v22 = vld [vmem:[%s1 + $0xc] sm:$0xf]
  %v23 = vld [vmem:[%s1 + $0x10] sm:$0xf]
  %v24 = vld [vmem:[%s1 + $0x14] sm:$0xf]
  %v25 = vld [vmem:[%s1 + $0x18] sm:$0xf]
  %v26 = vld [vmem:[%s1 + $0x1c] sm:$0xf]
  %v27 = vld [vmem:[%s1 + $0x20] sm:$0xf]
  %v28 = vld [vmem:[%s1 + $0x24] sm:$0xf]
  %v29 = vld [vmem:[%s1 + $0x28] sm:$0xf]
  %v30 = vld [vmem:[%s1 + $0x2c] sm:$0xf]
  %v31 = vld [vmem:[%s1 + $0x30] sm:$0xf]
  %v32 = vld [vmem:[%s1 + $0x34] sm:$0xf]
  %v33 = vld [vmem:[%s1 + $0x38] sm:$0xf]
  %v34 = vld [vmem:[%s1 + $0x3c] sm:$0xf]
  %v35 = vld [vmem:[%s1 + $0x40] sm:$0xf]
  %v36 = vld [vmem:[%s1 + $0x44] sm:$0xf]
  %v37 = vld [vmem:[%s1 + $0x48] sm:$0xf]
  %v38 = vld [vmem:[%s1 + $0x4c] sm:$0xf]
  %v39 = vld [vmem:[%s1 + $0x50] sm:$0xf]
  %v40 = vld [vmem:[%s1 + $0x54] sm:$0xf]
  %v41 = vld [vmem:[%s1 + $0x58] sm:$0xf]
  %v42 = vld [vmem:[%s1 + $0x5c] sm:$0xf]
  %v43 = vld [vmem:[%s1 + $0x60] sm:$0xf]
  %v44 = vld [vmem:[%s1 + $0x64] sm:$0xf]
  %v45 = vld [vmem:[%s1 + $0x68] sm:$0xf]
  %v46 = vld [vmem:[%s1 + $0x6c] sm:$0xf]
  %v47 = vld [vmem:[%s1 + $0x70] sm:$0xf]
  %v48 = vld [vmem:[%s1 + $0x74] sm:$0xf]
  %v49 = vld [vmem:[%s1 + $0x78] sm:$0xf]
  %v50 = vld [vmem:[%s1 + $0x7c] sm:$0xf]
  %v51 = vld [vmem:[%s2] sm:$0x1]
  %v53 = vlaneseq
  %v54 = vshrl.u32 %v53, 7
  %v55 = vsub.s32 0, %v54
  %v56 = vrot.slane %v51, %v55
  %v62 = vunpack.c.l.b16 %v15
  %v63 = vunpack.c.h.b16 %v15
  %v64 = vunpack.c.l.b16 %v16
  %v65 = vunpack.c.h.b16 %v16
  %v66 = vunpack.c.l.b16 %v17
  %v67 = vunpack.c.h.b16 %v17
  %v68 = vunpack.c.l.b16 %v18
  %v69 = vunpack.c.h.b16 %v18
  %v70 = vpack.c.b16 %v64, %v62
  %v71 = vpack.c.b16 %v65, %v63
  %v72 = vpack.c.b16 %v68, %v66
  %v73 = vpack.c.b16 %v69, %v67
  %v110 = vunpack.c.l.b16 %v19
  %v111 = vunpack.c.l.b16 %v20
  %v112 = vunpack.c.l.b16 %v21
  %v113 = vunpack.c.l.b16 %v22
  %v114 = vunpack.c.l.b16 %v23
  %v115 = vunpack.c.l.b16 %v24
  %v116 = vunpack.c.l.b16 %v25
  %v117 = vunpack.c.l.b16 %v26
  %v118 = vunpack.c.l.b16 %v27
  %v119 = vunpack.c.l.b16 %v28
  %v120 = vunpack.c.l.b16 %v29
  %v121 = vunpack.c.l.b16 %v30
  %v122 = vunpack.c.l.b16 %v31
  %v123 = vunpack.c.l.b16 %v32
  %v124 = vunpack.c.l.b16 %v33
  %v125 = vunpack.c.l.b16 %v34
  %v126 = vunpack.c.l.b16 %v35
  %v127 = vunpack.c.l.b16 %v36
  %v128 = vunpack.c.l.b16 %v37
  %v129 = vunpack.c.l.b16 %v38
  %v130 = vunpack.c.l.b16 %v39
  %v131 = vunpack.c.l.b16 %v40
  %v132 = vunpack.c.l.b16 %v41
  %v133 = vunpack.c.l.b16 %v42
  %v134 = vunpack.c.l.b16 %v43
  %v135 = vunpack.c.l.b16 %v44
  %v136 = vunpack.c.l.b16 %v45
  %v137 = vunpack.c.l.b16 %v46
  %v138 = vunpack.c.l.b16 %v47
  %v139 = vunpack.c.l.b16 %v48
  %v140 = vunpack.c.l.b16 %v49
  %v141 = vunpack.c.l.b16 %v50
  %v142 = vpack.c.b16 %v111, %v110
  %v143 = vpack.c.b16 %v113, %v112
  %v144 = vpack.c.b16 %v115, %v114
  %v145 = vpack.c.b16 %v117, %v116
  %v146 = vpack.c.b16 %v119, %v118
  %v147 = vpack.c.b16 %v121, %v120
  %v148 = vpack.c.b16 %v123, %v122
  %v149 = vpack.c.b16 %v125, %v124
  %v150 = vpack.c.b16 %v127, %v126
  %v151 = vpack.c.b16 %v129, %v128
  %v152 = vpack.c.b16 %v131, %v130
  %v153 = vpack.c.b16 %v133, %v132
  %v154 = vpack.c.b16 %v135, %v134
  %v155 = vpack.c.b16 %v137, %v136
  %v156 = vpack.c.b16 %v139, %v138
  %v157 = vpack.c.b16 %v141, %v140
  %174 = vmatprep.subr.bf16.mxu0 0
  %175 = vmatpush1.bf16.msra.mxu0 %v142
  %176 = vmatprep.subr.bf16.mxu0 0
  %177 = vmatpush1.bf16.msra.mxu0 %v143
  %178 = vmatprep.subr.bf16.mxu0 0
  %179 = vmatpush1.bf16.msra.mxu0 %v144
  %180 = vmatprep.subr.bf16.mxu0 0
  %181 = vmatpush1.bf16.msra.mxu0 %v145
  %182 = vmatprep.subr.bf16.mxu0 0
  %183 = vmatpush1.bf16.msra.mxu0 %v146
  %184 = vmatprep.subr.bf16.mxu0 0
  %185 = vmatpush1.bf16.msra.mxu0 %v147
  %186 = vmatprep.subr.bf16.mxu0 0
  %187 = vmatpush1.bf16.msra.mxu0 %v148
  %188 = vmatprep.subr.bf16.mxu0 0
  %189 = vmatpush1.bf16.msra.mxu0 %v149
  %190 = vmatprep.subr.bf16.mxu0 0
  %191 = vmatpush1.bf16.msra.mxu0 %v150
  %192 = vmatprep.subr.bf16.mxu0 0
  %193 = vmatpush1.bf16.msra.mxu0 %v151
  %194 = vmatprep.subr.bf16.mxu0 0
  %195 = vmatpush1.bf16.msra.mxu0 %v152
  %196 = vmatprep.subr.bf16.mxu0 0
  %197 = vmatpush1.bf16.msra.mxu0 %v153
  %198 = vmatprep.subr.bf16.mxu0 0
  %199 = vmatpush1.bf16.msra.mxu0 %v154
  %200 = vmatprep.subr.bf16.mxu0 0
  %201 = vmatpush1.bf16.msra.mxu0 %v155
  %202 = vmatprep.subr.bf16.mxu0 0
  %203 = vmatpush1.bf16.msra.mxu0 %v156
  %204 = vmatprep.subr.bf16.mxu0 0
  %205 = vmatpush1.bf16.msra.mxu0 %v157
  %206 = vmatprep.mubr.bf16.mxu0 %v71
  %207 = vmatmul.mubr.bf16.gmra.mrb[0].mxu0 %v70
  %v208 = vpop.f32.mrb[0].mxu0
  %v209 = vadd.f32 %v56, %v208
  %v210 = vpop.f32.mrb[0].mxu0
  %v211 = vpop.f32.mrb[0].mxu0
  %v212 = vadd.f32 %v56, %v211
  %v213 = vpop.f32.mrb[0].mxu0
  %214 = vmatprep.mubr.bf16.mxu0 %v73
  %215 = vmatmul.mubr.bf16.gmra.mrb[0].mxu0 %v72
  %v216 = vpop.f32.mrb[0].mxu0
  %v217 = vadd.f32 %v56, %v216
  %v218 = vpop.f32.mrb[0].mxu0
  %v219 = vpop.f32.mrb[0].mxu0
  %v220 = vadd.f32 %v56, %v219
  %v221 = vpop.f32.mrb[0].mxu0
  %222 = vdwg.mxu0
  %v223 = vmax.f32 %v209, 0.0
  %v224 = vmax.f32 %v212, 0.0
  %v225 = vmax.f32 %v217, 0.0
  %v226 = vmax.f32 %v220, 0.0
  %v227 = vpack.c.bf16 %v224, %v223
  %v228 = vpack.c.bf16 %v226, %v225
  %v231 = vunpack.c.l.b16 %v227
  %v232 = vunpack.c.h.b16 %v227
  %v233 = vunpack.c.l.b16 %v228
  %v234 = vunpack.c.h.b16 %v228
  %v235 = vpack.c.b16 %v231, %v231
  %v236 = vpack.c.b16 %v232, %v232
  %v237 = vpack.c.b16 %v233, %v233
  %v238 = vpack.c.b16 %v234, %v234
  %243 = vst [vmem:[%s3] sm:$0xf] %v235
  %244 = vst [vmem:[%s3 + $0x4] sm:$0xf] %v236
  %245 = vst [vmem:[%s3 + $0x8] sm:$0xf] %v237
  %246 = vst [vmem:[%s3 + $0xc] sm:$0xf] %v238
  // Predicated region
  $region14: #{autoencoder_forward.6} parent=0 // pred_check
    _
  $region15: #{autoencoder_forward.6} parent=0 // pred_check_branch
    %248 = sbr.rel (0) target = $region17
  $region16: #{autoencoder_forward.6} parent=0 // pred_region
    _
  $region17: #{autoencoder_forward.6} parent=0 // pred_fallthru
    _
  // Predicated region
  $region18: #{autoencoder_forward.6} parent=0 // pred_check
    _
  $region19: #{autoencoder_forward.6} parent=0 // pred_check_branch
    %250 = sbr.rel (0) target = $region21
  $region20: #{autoencoder_forward.6} parent=0 // pred_region
    _
  $region21: #{autoencoder_forward.6} parent=0 // pred_fallthru
    _

// kernel: autoencoder_forward.7
$region0: #{autoencoder_forward.7}
  #allocation0 [shape = 'u32[]', space=smem, size = 0x4, offset = 0x4, fixed_abs, tag = 'smem constant byte address 0x4 - core index']
  #allocation1 [shape = 'u32[144,128]{1,0:T(1,128)}', space=vmem, size = 0x12000, scoped, tag = 'internal scratch']
  %s0 = inlined_call_operand.vmem [shape: bf16[32,32], index: 0, kind: input, shape index: {}]
  %s1 = inlined_call_operand.vmem [shape: bf16[32,128], index: 1, kind: input, shape index: {}]
  %s2 = inlined_call_operand.vmem [shape: f32[1,128], index: 2, kind: input, shape index: {}]
  %s3 = inlined_call_operand.vmem [shape: bf16[32,128], index: 3, kind: output, shape index: {}]
  %s4 = sld [smem:[#allocation0]]
  $region22: #{autoencoder_forward.7} parent=0
    _
  %s6 = ssub.s32 1, %s4
  %s7 = scalar_select 0, %s6, %s4
  // Predicated region
  $region2: #{autoencoder_forward.7} parent=0 // pred_check
    _
  $region3: #{autoencoder_forward.7} parent=0 // pred_check_branch
    %9 = sbr.rel (0) target = $region5
  $region4: #{autoencoder_forward.7} parent=0 // pred_region
    _
  $region5: #{autoencoder_forward.7} parent=0 // pred_fallthru
    _
  // Predicated region
  $region6: #{autoencoder_forward.7} parent=0 // pred_check
    _
  $region7: #{autoencoder_forward.7} parent=0 // pred_check_branch
    %11 = sbr.rel (0) target = $region9
  $region8: #{autoencoder_forward.7} parent=0 // pred_region
    _
  $region9: #{autoencoder_forward.7} parent=0 // pred_fallthru
    _
  // Predicated region
  $region10: #{autoencoder_forward.7} parent=0 // pred_check
    _
  $region11: #{autoencoder_forward.7} parent=0 // pred_check_branch
    %13 = sbr.rel (0) target = $region13
  $region12: #{autoencoder_forward.7} parent=0 // pred_region
    _
  $region13: #{autoencoder_forward.7} parent=0 // pred_fallthru
    _
  %v15 = vld [vmem:[%s0] sm:$0xf]
  %v16 = vld [vmem:[%s0 + $0x4] sm:$0xf]
  %v17 = vld [vmem:[%s0 + $0x8] sm:$0xf]
  %v18 = vld [vmem:[%s0 + $0xc] sm:$0xf]
  %v19 = vld [vmem:[%s1] sm:$0xf]
  %v20 = vld [vmem:[%s1 + $0x4] sm:$0xf]
  %v21 = vld [vmem:[%s1 + $0x8] sm:$0xf]
  %v22 = vld [vmem:[%s1 + $0xc] sm:$0xf]
  %v23 = vld [vmem:[%s2] sm:$0x1]
  %v25 = vlaneseq
  %v26 = vshrl.u32 %v25, 7
  %v27 = vsub.s32 0, %v26
  %v28 = vrot.slane %v23, %v27
  %v34 = vunpack.c.l.b16 %v15
  %v35 = vunpack.c.l.b16 %v16
  %v36 = vunpack.c.l.b16 %v17
  %v37 = vunpack.c.l.b16 %v18
  %v38 = vpack.c.b16 %v35, %v34
  %v39 = vpack.c.b16 %v37, %v36
  %v44 = vunpack.c.l.b16 %v19
  %v45 = vunpack.c.l.b16 %v20
  %v46 = vunpack.c.l.b16 %v21
  %v47 = vunpack.c.l.b16 %v22
  %v48 = vpack.c.b16 %v45, %v44
  %v49 = vpack.c.b16 %v47, %v46
  %vm52 = vcmask 261120
  %v54 = vsel %vm52, %v38, 0
  %v57 = vsel %vm52, %v39, 0
  %59 = vmatprep.subr.bf16.mxu0 0
  %60 = vmatpush1.bf16.msra.mxu0 %v48
  %61 = vmatprep.subr.bf16.mxu0 0
  %62 = vmatpush1.bf16.msra.mxu0 %v49
  %63 = vmatprep.subr.bf16.mxu0 0
  %64 = vmatpush1.bf16.msra.mxu0 0
  %65 = vmatprep.subr.bf16.mxu0 0
  %66 = vmatpush1.bf16.msra.mxu0 0
  %67 = vmatprep.subr.bf16.mxu0 0
  %68 = vmatpush1.bf16.msra.mxu0 0
  %69 = vmatprep.subr.bf16.mxu0 0
  %70 = vmatpush1.bf16.msra.mxu0 0
  %71 = vmatprep.subr.bf16.mxu0 0
  %72 = vmatpush1.bf16.msra.mxu0 0
  %73 = vmatprep.subr.bf16.mxu0 0
  %74 = vmatpush1.bf16.msra.mxu0 0
  %75 = vmatprep.subr.bf16.mxu0 0
  %76 = vmatpush1.bf16.msra.mxu0 0
  %77 = vmatprep.subr.bf16.mxu0 0
  %78 = vmatpush1.bf16.msra.mxu0 0
  %79 = vmatprep.subr.bf16.mxu0 0
  %80 = vmatpush1.bf16.msra.mxu0 0
  %81 = vmatprep.subr.bf16.mxu0 0
  %82 = vmatpush1.bf16.msra.mxu0 0
  %83 = vmatprep.subr.bf16.mxu0 0
  %84 = vmatpush1.bf16.msra.mxu0 0
  %85 = vmatprep.subr.bf16.mxu0 0
  %86 = vmatpush1.bf16.msra.mxu0 0
  %87 = vmatprep.subr.bf16.mxu0 0
  %88 = vmatpush1.bf16.msra.mxu0 0
  %89 = vmatprep.subr.bf16.mxu0 0
  %90 = vmatpush1.bf16.msra.mxu0 0
  %91 = vmatprep.mubr.bf16.mxu0 0
  %92 = vmatmul.mubr.bf16.gmra.mrb[0].mxu0 %v54
  %v93 = vpop.f32.mrb[0].mxu0
  %v94 = vadd.f32 %v28, %v93
  %v95 = vpop.f32.mrb[0].mxu0
  %v96 = vpop.f32.mrb[0].mxu0
  %v97 = vadd.f32 %v28, %v96
  %v98 = vpop.f32.mrb[0].mxu0
  %99 = vmatprep.mubr.bf16.mxu0 0
  %100 = vmatmul.mubr.bf16.gmra.mrb[0].mxu0 %v57
  %v101 = vpop.f32.mrb[0].mxu0
  %v102 = vadd.f32 %v28, %v101
  %v103 = vpop.f32.mrb[0].mxu0
  %v104 = vpop.f32.mrb[0].mxu0
  %v105 = vadd.f32 %v28, %v104
  %v106 = vpop.f32.mrb[0].mxu0
  %107 = vdwg.mxu0
  %v108 = vmax.f32 %v94, 0.0
  %v109 = vmax.f32 %v97, 0.0
  %v110 = vmax.f32 %v102, 0.0
  %v111 = vmax.f32 %v105, 0.0
  %v112 = vpack.c.bf16 %v109, %v108
  %v113 = vpack.c.bf16 %v111, %v110
  %v116 = vunpack.c.l.b16 %v112
  %v117 = vunpack.c.h.b16 %v112
  %v118 = vunpack.c.l.b16 %v113
  %v119 = vunpack.c.h.b16 %v113
  %v120 = vpack.c.b16 %v116, %v116
  %v121 = vpack.c.b16 %v117, %v117
  %v122 = vpack.c.b16 %v118, %v118
  %v123 = vpack.c.b16 %v119, %v119
  %128 = vst [vmem:[%s3] sm:$0xf] %v120
  %129 = vst [vmem:[%s3 + $0x4] sm:$0xf] %v121
  %130 = vst [vmem:[%s3 + $0x8] sm:$0xf] %v122
  %131 = vst [vmem:[%s3 + $0xc] sm:$0xf] %v123
  // Predicated region
  $region14: #{autoencoder_forward.7} parent=0 // pred_check
    _
  $region15: #{autoencoder_forward.7} parent=0 // pred_check_branch
    %133 = sbr.rel (0) target = $region17
  $region16: #{autoencoder_forward.7} parent=0 // pred_region
    _
  $region17: #{autoencoder_forward.7} parent=0 // pred_fallthru
    _
  // Predicated region
  $region18: #{autoencoder_forward.7} parent=0 // pred_check
    _
  $region19: #{autoencoder_forward.7} parent=0 // pred_check_branch
    %135 = sbr.rel (0) target = $region21
  $region20: #{autoencoder_forward.7} parent=0 // pred_region
    _
  $region21: #{autoencoder_forward.7} parent=0 // pred_fallthru
    _

// kernel: autoencoder_forward.8
$region0: #{autoencoder_forward.8}
  #allocation0 [shape = 'u32[]', space=smem, size = 0x4, offset = 0x4, fixed_abs, tag = 'smem constant byte address 0x4 - core index']
  #allocation1 [shape = 'u32[144,128]{1,0:T(1,128)}', space=vmem, size = 0x12000, scoped, tag = 'internal scratch']
  %s0 = inlined_call_operand.vmem [shape: bf16[176,64], index: 0, kind: input, shape index: {}]
  %s1 = inlined_call_operand.vmem [shape: bf16[64,128], index: 1, kind: input, shape index: {}]
  %s2 = inlined_call_operand.vmem [shape: f32[1,128], index: 2, kind: input, shape index: {}]
  %s3 = inlined_call_operand.vmem [shape: bf16[176,128], index: 3, kind: output, shape index: {}]
  %s4 = sld [smem:[#allocation0]]
  $region22: #{autoencoder_forward.8} parent=0
    _
  %s6 = ssub.s32 1, %s4
  %s7 = scalar_select 0, %s6, %s4
  // Predicated region
  $region2: #{autoencoder_forward.8} parent=0 // pred_check
    _
  $region3: #{autoencoder_forward.8} parent=0 // pred_check_branch
    %9 = sbr.rel (0) target = $region5
  $region4: #{autoencoder_forward.8} parent=0 // pred_region
    _
  $region5: #{autoencoder_forward.8} parent=0 // pred_fallthru
    _
  // Predicated region
  $region6: #{autoencoder_forward.8} parent=0 // pred_check
    _
  $region7: #{autoencoder_forward.8} parent=0 // pred_check_branch
    %11 = sbr.rel (0) target = $region9
  $region8: #{autoencoder_forward.8} parent=0 // pred_region
    _
  $region9: #{autoencoder_forward.8} parent=0 // pred_fallthru
    _
  // Predicated region
  $region10: #{autoencoder_forward.8} parent=0 // pred_check
    _
  $region11: #{autoencoder_forward.8} parent=0 // pred_check_branch
    %13 = sbr.rel (0) target = $region13
  $region12: #{autoencoder_forward.8} parent=0 // pred_region
    _
  $region13: #{autoencoder_forward.8} parent=0 // pred_fallthru
    _
  %v15 = vld [vmem:[%s0] sm:$0xf]
  %v16 = vld [vmem:[%s0 + $0x4] sm:$0xf]
  %v17 = vld [vmem:[%s0 + $0x8] sm:$0xf]
  %v18 = vld [vmem:[%s0 + $0xc] sm:$0xf]
  %v19 = vld [vmem:[%s0 + $0x10] sm:$0xf]
  %v20 = vld [vmem:[%s0 + $0x14] sm:$0xf]
  %v21 = vld [vmem:[%s0 + $0x18] sm:$0xf]
  %v22 = vld [vmem:[%s0 + $0x1c] sm:$0xf]
  %v23 = vld [vmem:[%s0 + $0x20] sm:$0xf]
  %v24 = vld [vmem:[%s0 + $0x24] sm:$0xf]
  %v25 = vld [vmem:[%s0 + $0x28] sm:$0xf]
  %v26 = vld [vmem:[%s0 + $0x2c] sm:$0xf]
  %v27 = vld [vmem:[%s0 + $0x30] sm:$0xf]
  %v28 = vld [vmem:[%s0 + $0x34] sm:$0xf]
  %v29 = vld [vmem:[%s0 + $0x38] sm:$0xf]
  %v30 = vld [vmem:[%s0 + $0x3c] sm:$0xf]
  %v31 = vld [vmem:[%s0 + $0x40] sm:$0xf]
  %v32 = vld [vmem:[%s0 + $0x44] sm:$0xf]
  %v33 = vld [vmem:[%s0 + $0x48] sm:$0xf]
  %v34 = vld [vmem:[%s0 + $0x4c] sm:$0xf]
  %v35 = vld [vmem:[%s0 + $0x50] sm:$0xf]
  %v36 = vld [vmem:[%s0 + $0x54] sm:$0xf]
  %v37 = vld [vmem:[%s1] sm:$0xf]
  %v38 = vld [vmem:[%s1 + $0x4] sm:$0xf]
  %v39 = vld [vmem:[%s1 + $0x8] sm:$0xf]
  %v40 = vld [vmem:[%s1 + $0xc] sm:$0xf]
  %v41 = vld [vmem:[%s1 + $0x10] sm:$0xf]
  %v42 = vld [vmem:[%s1 + $0x14] sm:$0xf]
  %v43 = vld [vmem:[%s1 + $0x18] sm:$0xf]
  %v44 = vld [vmem:[%s1 + $0x1c] sm:$0xf]
  %v45 = vld [vmem:[%s2] sm:$0x1]
  %v47 = vlaneseq
  %v48 = vshrl.u32 %v47, 7
  %v49 = vsub.s32 0, %v48
  %v50 = vrot.slane %v45, %v49
  %v74 = vunpack.c.l.b16 %v15
  %v75 = vunpack.c.l.b16 %v16
  %v76 = vunpack.c.l.b16 %v17
  %v77 = vunpack.c.l.b16 %v18
  %v78 = vunpack.c.l.b16 %v19
  %v79 = vunpack.c.l.b16 %v20
  %v80 = vunpack.c.l.b16 %v21
  %v81 = vunpack.c.l.b16 %v22
  %v82 = vunpack.c.l.b16 %v23
  %v83 = vunpack.c.l.b16 %v24
  %v84 = vunpack.c.l.b16 %v25
  %v85 = vunpack.c.l.b16 %v26
  %v86 = vunpack.c.l.b16 %v27
  %v87 = vunpack.c.l.b16 %v28
  %v88 = vunpack.c.l.b16 %v29
  %v89 = vunpack.c.l.b16 %v30
  %v90 = vunpack.c.l.b16 %v31
  %v91 = vunpack.c.l.b16 %v32
  %v92 = vunpack.c.l.b16 %v33
  %v93 = vunpack.c.l.b16 %v34
  %v94 = vunpack.c.l.b16 %v35
  %v95 = vunpack.c.l.b16 %v36
  %v96 = vpack.c.b16 %v75, %v74
  %v97 = vpack.c.b16 %v77, %v76
  %v98 = vpack.c.b16 %v79, %v78
  %v99 = vpack.c.b16 %v81, %v80
  %v100 = vpack.c.b16 %v83, %v82
  %v101 = vpack.c.b16 %v85, %v84
  %v102 = vpack.c.b16 %v87, %v86
  %v103 = vpack.c.b16 %v89, %v88
  %v104 = vpack.c.b16 %v91, %v90
  %v105 = vpack.c.b16 %v93, %v92
  %v106 = vpack.c.b16 %v95, %v94
  %v115 = vunpack.c.l.b16 %v37
  %v116 = vunpack.c.l.b16 %v38
  %v117 = vunpack.c.l.b16 %v39
  %v118 = vunpack.c.l.b16 %v40
  %v119 = vunpack.c.l.b16 %v41
  %v120 = vunpack.c.l.b16 %v42
  %v121 = vunpack.c.l.b16 %v43
  %v122 = vunpack.c.l.b16 %v44
  %v123 = vpack.c.b16 %v116, %v115
  %v124 = vpack.c.b16 %v118, %v117
  %v125 = vpack.c.b16 %v120, %v119
  %v126 = vpack.c.b16 %v122, %v121
  %vm131 = vcmask 523264
  %v133 = vsel %vm131, %v96, 0
  %v136 = vsel %vm131, %v97, 0
  %v139 = vsel %vm131, %v98, 0
  %v142 = vsel %vm131, %v99, 0
  %v145 = vsel %vm131, %v100, 0
  %v148 = vsel %vm131, %v101, 0
  %v151 = vsel %vm131, %v102, 0
  %v154 = vsel %vm131, %v103, 0
  %v157 = vsel %vm131, %v104, 0
  %v160 = vsel %vm131, %v105, 0
  %v163 = vsel %vm131, %v106, 0
  %165 = vmatprep.subr.bf16.mxu0 0
  %166 = vmatpush1.bf16.msra.mxu0 %v123
  %167 = vmatprep.subr.bf16.mxu0 0
  %168 = vmatpush1.bf16.msra.mxu0 %v124
  %169 = vmatprep.subr.bf16.mxu0 0
  %170 = vmatpush1.bf16.msra.mxu0 %v125
  %171 = vmatprep.subr.bf16.mxu0 0
  %172 = vmatpush1.bf16.msra.mxu0 %v126
  %173 = vmatprep.subr.bf16.mxu0 0
  %174 = vmatpush1.bf16.msra.mxu0 0
  %175 = vmatprep.subr.bf16.mxu0 0
  %176 = vmatpush1.bf16.msra.mxu0 0
  %177 = vmatprep.subr.bf16.mxu0 0
  %178 = vmatpush1.bf16.msra.mxu0 0
  %179 = vmatprep.subr.bf16.mxu0 0
  %180 = vmatpush1.bf16.msra.mxu0 0
  %181 = vmatprep.subr.bf16.mxu0 0
  %182 = vmatpush1.bf16.msra.mxu0 0
  %183 = vmatprep.subr.bf16.mxu0 0
  %184 = vmatpush1.bf16.msra.mxu0 0
  %185 = vmatprep.subr.bf16.mxu0 0
  %186 = vmatpush1.bf16.msra.mxu0 0
  %187 = vmatprep.subr.bf16.mxu0 0
  %188 = vmatpush1.bf16.msra.mxu0 0
  %189 = vmatprep.subr.bf16.mxu0 0
  %190 = vmatpush1.bf16.msra.mxu0 0
  %191 = vmatprep.subr.bf16.mxu0 0
  %192 = vmatpush1.bf16.msra.mxu0 0
  %193 = vmatprep.subr.bf16.mxu0 0
  %194 = vmatpush1.bf16.msra.mxu0 0
  %195 = vmatprep.subr.bf16.mxu0 0
  %196 = vmatpush1.bf16.msra.mxu0 0
  %197 = vmatprep.mubr.bf16.mxu0 0
  %198 = vmatmul.mubr.bf16.gmra.mrb[0].mxu0 %v133
  %v199 = vpop.f32.mrb[0].mxu0
  %v200 = vadd.f32 %v50, %v199
  %v201 = vpop.f32.mrb[0].mxu0
  %v202 = vpop.f32.mrb[0].mxu0
  %v203 = vadd.f32 %v50, %v202
  %v204 = vpop.f32.mrb[0].mxu0
  %205 = vmatprep.mubr.bf16.mxu0 0
  %206 = vmatmul.mubr.bf16.gmra.mrb[0].mxu0 %v136
  %v207 = vpop.f32.mrb[0].mxu0
  %v208 = vadd.f32 %v50, %v207
  %v209 = vpop.f32.mrb[0].mxu0
  %v210 = vpop.f32.mrb[0].mxu0
  %v211 = vadd.f32 %v50, %v210
  %v212 = vpop.f32.mrb[0].mxu0
  %213 = vmatprep.mubr.bf16.mxu0 0
  %214 = vmatmul.mubr.bf16.gmra.mrb[0].mxu0 %v139
  %v215 = vpop.f32.mrb[0].mxu0
  %v216 = vadd.f32 %v50, %v215
  %v217 = vpop.f32.mrb[0].mxu0
  %v218 = vpop.f32.mrb[0].mxu0
  %v219 = vadd.f32 %v50, %v218
  %v220 = vpop.f32.mrb[0].mxu0
  %221 = vmatprep.mubr.bf16.mxu0 0
  %222 = vmatmul.mubr.bf16.gmra.mrb[0].mxu0 %v142
  %v223 = vpop.f32.mrb[0].mxu0
  %v224 = vadd.f32 %v50, %v223
  %v225 = vpop.f32.mrb[0].mxu0
  %v226 = vpop.f32.mrb[0].mxu0
  %v227 = vadd.f32 %v50, %v226
  %v228 = vpop.f32.mrb[0].mxu0
  %229 = vmatprep.mubr.bf16.mxu0 0
  %230 = vmatmul.mubr.bf16.gmra.mrb[0].mxu0 %v145
  %v231 = vpop.f32.mrb[0].mxu0
  %v232 = vadd.f32 %v50, %v231
  %v233 = vpop.f32.mrb[0].mxu0
  %v234 = vpop.f32.mrb[0].mxu0
  %v235 = vadd.f32 %v50, %v234
  %v236 = vpop.f32.mrb[0].mxu0
  %237 = vmatprep.mubr.bf16.mxu0 0
  %238 = vmatmul.mubr.bf16.gmra.mrb[0].mxu0 %v148
  %v239 = vpop.f32.mrb[0].mxu0
  %v240 = vadd.f32 %v50, %v239
  %v241 = vpop.f32.mrb[0].mxu0
  %v242 = vpop.f32.mrb[0].mxu0
  %v243 = vadd.f32 %v50, %v242
  %v244 = vpop.f32.mrb[0].mxu0
  %245 = vmatprep.mubr.bf16.mxu0 0
  %246 = vmatmul.mubr.bf16.gmra.mrb[0].mxu0 %v151
  %v247 = vpop.f32.mrb[0].mxu0
  %v248 = vadd.f32 %v50, %v247
  %v249 = vpop.f32.mrb[0].mxu0
  %v250 = vpop.f32.mrb[0].mxu0
  %v251 = vadd.f32 %v50, %v250
  %v252 = vpop.f32.mrb[0].mxu0
  %253 = vmatprep.mubr.bf16.mxu0 0
  %254 = vmatmul.mubr.bf16.gmra.mrb[0].mxu0 %v154
  %v255 = vpop.f32.mrb[0].mxu0
  %v256 = vadd.f32 %v50, %v255
  %v257 = vpop.f32.mrb[0].mxu0
  %v258 = vpop.f32.mrb[0].mxu0
  %v259 = vadd.f32 %v50, %v258
  %v260 = vpop.f32.mrb[0].mxu0
  %261 = vmatprep.mubr.bf16.mxu0 0
  %262 = vmatmul.mubr.bf16.gmra.mrb[0].mxu0 %v157
  %v263 = vpop.f32.mrb[0].mxu0
  %v264 = vadd.f32 %v50, %v263
  %v265 = vpop.f32.mrb[0].mxu0
  %v266 = vpop.f32.mrb[0].mxu0
  %v267 = vadd.f32 %v50, %v266
  %v268 = vpop.f32.mrb[0].mxu0
  %269 = vmatprep.mubr.bf16.mxu0 0
  %270 = vmatmul.mubr.bf16.gmra.mrb[0].mxu0 %v160
  %v271 = vpop.f32.mrb[0].mxu0
  %v272 = vadd.f32 %v50, %v271
  %v273 = vpop.f32.mrb[0].mxu0
  %v274 = vpop.f32.mrb[0].mxu0
  %v275 = vadd.f32 %v50, %v274
  %v276 = vpop.f32.mrb[0].mxu0
  %277 = vmatprep.mubr.bf16.mxu0 0
  %278 = vmatmul.mubr.bf16.gmra.mrb[0].mxu0 %v163
  %v279 = vpop.f32.mrb[0].mxu0
  %v280 = vadd.f32 %v50, %v279
  %v281 = vpop.f32.mrb[0].mxu0
  %v282 = vpop.f32.mrb[0].mxu0
  %v283 = vadd.f32 %v50, %v282
  %v284 = vpop.f32.mrb[0].mxu0
  %285 = vdwg.mxu0
  %v286 = vmax.f32 %v200, 0.0
  %v287 = vmax.f32 %v203, 0.0
  %v288 = vmax.f32 %v208, 0.0
  %v289 = vmax.f32 %v211, 0.0
  %v290 = vmax.f32 %v216, 0.0
  %v291 = vmax.f32 %v219, 0.0
  %v292 = vmax.f32 %v224, 0.0
  %v293 = vmax.f32 %v227, 0.0
  %v294 = vmax.f32 %v232, 0.0
  %v295 = vmax.f32 %v235, 0.0
  %v296 = vmax.f32 %v240, 0.0
  %v297 = vmax.f32 %v243, 0.0
  %v298 = vmax.f32 %v248, 0.0
  %v299 = vmax.f32 %v251, 0.0
  %v300 = vmax.f32 %v256, 0.0
  %v301 = vmax.f32 %v259, 0.0
  %v302 = vmax.f32 %v264, 0.0
  %v303 = vmax.f32 %v267, 0.0
  %v304 = vmax.f32 %v272, 0.0
  %v305 = vmax.f32 %v275, 0.0
  %v306 = vmax.f32 %v280, 0.0
  %v307 = vmax.f32 %v283, 0.0
  %v308 = vpack.c.bf16 %v287, %v286
  %v309 = vpack.c.bf16 %v289, %v288
  %v310 = vpack.c.bf16 %v291, %v290
  %v311 = vpack.c.bf16 %v293, %v292
  %v312 = vpack.c.bf16 %v295, %v294
  %v313 = vpack.c.bf16 %v297, %v296
  %v314 = vpack.c.bf16 %v299, %v298
  %v315 = vpack.c.bf16 %v301, %v300
  %v316 = vpack.c.bf16 %v303, %v302
  %v317 = vpack.c.bf16 %v305, %v304
  %v318 = vpack.c.bf16 %v307, %v306
  %v330 = vunpack.c.l.b16 %v308
  %v331 = vunpack.c.h.b16 %v308
  %v332 = vunpack.c.l.b16 %v309
  %v333 = vunpack.c.h.b16 %v309
  %v334 = vunpack.c.l.b16 %v310
  %v335 = vunpack.c.h.b16 %v310
  %v336 = vunpack.c.l.b16 %v311
  %v337 = vunpack.c.h.b16 %v311
  %v338 = vunpack.c.l.b16 %v312
  %v339 = vunpack.c.h.b16 %v312
  %v340 = vunpack.c.l.b16 %v313
  %v341 = vunpack.c.h.b16 %v313
  %v342 = vunpack.c.l.b16 %v314
  %v343 = vunpack.c.h.b16 %v314
  %v344 = vunpack.c.l.b16 %v315
  %v345 = vunpack.c.h.b16 %v315
  %v346 = vunpack.c.l.b16 %v316
  %v347 = vunpack.c.h.b16 %v316
  %v348 = vunpack.c.l.b16 %v317
  %v349 = vunpack.c.h.b16 %v317
  %v350 = vunpack.c.l.b16 %v318
  %v351 = vunpack.c.h.b16 %v318
  %v352 = vpack.c.b16 %v330, %v330
  %v353 = vpack.c.b16 %v331, %v331
  %v354 = vpack.c.b16 %v332, %v332
  %v355 = vpack.c.b16 %v333, %v333
  %v356 = vpack.c.b16 %v334, %v334
  %v357 = vpack.c.b16 %v335, %v335
  %v358 = vpack.c.b16 %v336, %v336
  %v359 = vpack.c.b16 %v337, %v337
  %v360 = vpack.c.b16 %v338, %v338
  %v361 = vpack.c.b16 %v339, %v339
  %v362 = vpack.c.b16 %v340, %v340
  %v363 = vpack.c.b16 %v341, %v341
  %v364 = vpack.c.b16 %v342, %v342
  %v365 = vpack.c.b16 %v343, %v343
  %v366 = vpack.c.b16 %v344, %v344
  %v367 = vpack.c.b16 %v345, %v345
  %v368 = vpack.c.b16 %v346, %v346
  %v369 = vpack.c.b16 %v347, %v347
  %v370 = vpack.c.b16 %v348, %v348
  %v371 = vpack.c.b16 %v349, %v349
  %v372 = vpack.c.b16 %v350, %v350
  %v373 = vpack.c.b16 %v351, %v351
  %396 = vst [vmem:[%s3] sm:$0xf] %v352
  %397 = vst [vmem:[%s3 + $0x4] sm:$0xf] %v353
  %398 = vst [vmem:[%s3 + $0x8] sm:$0xf] %v354
  %399 = vst [vmem:[%s3 + $0xc] sm:$0xf] %v355
  %400 = vst [vmem:[%s3 + $0x10] sm:$0xf] %v356
  %401 = vst [vmem:[%s3 + $0x14] sm:$0xf] %v357
  %402 = vst [vmem:[%s3 + $0x18] sm:$0xf] %v358
  %403 = vst [vmem:[%s3 + $0x1c] sm:$0xf] %v359
  %404 = vst [vmem:[%s3 + $0x20] sm:$0xf] %v360
  %405 = vst [vmem:[%s3 + $0x24] sm:$0xf] %v361
  %406 = vst [vmem:[%s3 + $0x28] sm:$0xf] %v362
  %407 = vst [vmem:[%s3 + $0x2c] sm:$0xf] %v363
  %408 = vst [vmem:[%s3 + $0x30] sm:$0xf] %v364
  %409 = vst [vmem:[%s3 + $0x34] sm:$0xf] %v365
  %410 = vst [vmem:[%s3 + $0x38] sm:$0xf] %v366
  %411 = vst [vmem:[%s3 + $0x3c] sm:$0xf] %v367
  %412 = vst [vmem:[%s3 + $0x40] sm:$0xf] %v368
  %413 = vst [vmem:[%s3 + $0x44] sm:$0xf] %v369
  %414 = vst [vmem:[%s3 + $0x48] sm:$0xf] %v370
  %415 = vst [vmem:[%s3 + $0x4c] sm:$0xf] %v371
  %416 = vst [vmem:[%s3 + $0x50] sm:$0xf] %v372
  %417 = vst [vmem:[%s3 + $0x54] sm:$0xf] %v373
  // Predicated region
  $region14: #{autoencoder_forward.8} parent=0 // pred_check
    _
  $region15: #{autoencoder_forward.8} parent=0 // pred_check_branch
    %419 = sbr.rel (0) target = $region17
  $region16: #{autoencoder_forward.8} parent=0 // pred_region
    _
  $region17: #{autoencoder_forward.8} parent=0 // pred_fallthru
    _
  // Predicated region
  $region18: #{autoencoder_forward.8} parent=0 // pred_check
    _
  $region19: #{autoencoder_forward.8} parent=0 // pred_check_branch
    %421 = sbr.rel (0) target = $region21
  $region20: #{autoencoder_forward.8} parent=0 // pred_region
    _
  $region21: #{autoencoder_forward.8} parent=0 // pred_fallthru
    _

// kernel: autoencoder_forward.9
$region0: #{autoencoder_forward.9}
  #allocation0 [shape = 'u32[]', space=smem, size = 0x4, offset = 0x4, fixed_abs, tag = 'smem constant byte address 0x4 - core index']
  #allocation1 [shape = 'u32[144,128]{1,0:T(1,128)}', space=vmem, size = 0x12000, scoped, tag = 'internal scratch']
  %s0 = inlined_call_operand.vmem [shape: bf16[608,32], index: 0, kind: input, shape index: {}]
  %s1 = inlined_call_operand.vmem [shape: bf16[32,128], index: 1, kind: input, shape index: {}]
  %s2 = inlined_call_operand.vmem [shape: f32[1,128], index: 2, kind: input, shape index: {}]
  %s3 = inlined_call_operand.vmem [shape: f32[608,128], index: 3, kind: output, shape index: {}]
  %s4 = sld [smem:[#allocation0]]
  $region45: #{autoencoder_forward.9} parent=0
    _
  %s6 = ssub.s32 1, %s4
  %s7 = scalar_select 0, %s6, %s4
  loop: start=0, step=1, limit=4
  $region2: #{autoencoder_forward.9} parent=0 // loop_pre_header
    _
  $region3: #{autoencoder_forward.9} parent=0 // loop_header
    %s9 = sphi 0, %s13
    %p10 = scmp.ge.s32.totalorder %s9, 4
    %s19 = sphi 0, %s21
    %s22 = sphi 0, %s19
    %s23 = sphi 0, %s22
    %s39 = sphi 0, %s23
    %s43 = sphi 0, %s43
    %s45 = sphi 0, %s43
    %s46 = sphi 0, %s45
    %s60 = sphi 0, %s46
    %s64 = sphi 0, %s64
    %s66 = sphi 0, %s64
    %s67 = sphi 0, %s66
    %s81 = sphi 0, %s67
    %s87 = sphi 0, %s89
    %s90 = sphi 0, %s87
    %s91 = sphi 0, %s90
    %s107 = sphi 0, %s91
  $region4: #{autoencoder_forward.9} parent=0 // loop_header_branch
    %12 = sbr.rel (%p10) target = $region8
  $region5: #{autoencoder_forward.9} parent=0 // loop_body
    %s14 = ssub.s32 %s9, 1
    %s15 = ssub.s32 %s9, 2
    %s16 = sadd.s32 %s9, 1
    %s17 = ssub.s32 %s9, %s16
    %p18 = scmp.eq.s32.totalorder %s17, 0
    %s20 = sadd.s32 %s19, 1
    %s21 = scalar_select %p18, %s19, %s20
    %p24 = pneg %p18
    %p25 = scmp.eq.s32.totalorder %s9, 1
    %p26 = por %p24, %p25
    %p27 = scmp.ne.s32.totalorder %s19, %s22
    %p28 = scmp.eq.s32.totalorder %s9, 0
    %p29 = por %p27, %p28
    %p30 = scmp.ne.s32.totalorder %s19, %s22
    %p31 = scmp.eq.s32.totalorder %s14, 1
    %p32 = por %p30, %p31
    %p33 = scmp.ne.s32.totalorder %s22, %s23
    %p34 = scmp.eq.s32.totalorder %s14, 0
    %p35 = por %p33, %p34
    %p36 = scmp.ne.s32.totalorder %s22, %s23
    %p37 = scmp.eq.s32.totalorder %s15, 1
    %p38 = por %p36, %p37
    %p40 = scmp.ne.s32.totalorder %s23, %s39
    %p41 = scmp.eq.s32.totalorder %s15, 0
    %p42 = por %p40, %p41
    %s44 = sadd.s32 %s43, 1
    %p47 = scmp.eq.s32.totalorder %s9, 1
    %p48 = scmp.ne.s32.totalorder %s43, %s45
    %p49 = scmp.eq.s32.totalorder %s9, 0
    %p50 = por %p48, %p49
    %p51 = scmp.ne.s32.totalorder %s43, %s45
    %p52 = scmp.eq.s32.totalorder %s14, 1
    %p53 = por %p51, %p52
    %p54 = scmp.ne.s32.totalorder %s45, %s46
    %p55 = scmp.eq.s32.totalorder %s14, 0
    %p56 = por %p54, %p55
    %p57 = scmp.ne.s32.totalorder %s45, %s46
    %p58 = scmp.eq.s32.totalorder %s15, 1
    %p59 = por %p57, %p58
    %p61 = scmp.ne.s32.totalorder %s46, %s60
    %p62 = scmp.eq.s32.totalorder %s15, 0
    %p63 = por %p61, %p62
    %s65 = sadd.s32 %s64, 1
    %p68 = scmp.eq.s32.totalorder %s9, 1
    %p69 = scmp.ne.s32.totalorder %s64, %s66
    %p70 = scmp.eq.s32.totalorder %s9, 0
    %p71 = por %p69, %p70
    %p72 = scmp.ne.s32.totalorder %s64, %s66
    %p73 = scmp.eq.s32.totalorder %s14, 1
    %p74 = por %p72, %p73
    %p75 = scmp.ne.s32.totalorder %s66, %s67
    %p76 = scmp.eq.s32.totalorder %s14, 0
    %p77 = por %p75, %p76
    %p78 = scmp.ne.s32.totalorder %s66, %s67
    %p79 = scmp.eq.s32.totalorder %s15, 1
    %p80 = por %p78, %p79
    %p82 = scmp.ne.s32.totalorder %s67, %s81
    %p83 = scmp.eq.s32.totalorder %s15, 0
    %p84 = por %p82, %p83
    %s85 = ssub.s32 %s9, %s16
    %p86 = scmp.eq.s32.totalorder %s85, 0
    %s88 = sadd.s32 %s87, 1
    %s89 = scalar_select %p86, %s87, %s88
    %p92 = pneg %p86
    %p93 = scmp.eq.s32.totalorder %s9, 1
    %p94 = por %p92, %p93
    %p95 = scmp.ne.s32.totalorder %s87, %s90
    %p96 = scmp.eq.s32.totalorder %s9, 0
    %p97 = por %p95, %p96
    %p98 = scmp.ne.s32.totalorder %s87, %s90
    %p99 = scmp.eq.s32.totalorder %s14, 1
    %p100 = por %p98, %p99
    %p101 = scmp.ne.s32.totalorder %s90, %s91
    %p102 = scmp.eq.s32.totalorder %s14, 0
    %p103 = por %p101, %p102
    %p104 = scmp.ne.s32.totalorder %s90, %s91
    %p105 = scmp.eq.s32.totalorder %s15, 1
    %p106 = por %p104, %p105
    %p108 = scmp.ne.s32.totalorder %s91, %s107
    %p109 = scmp.eq.s32.totalorder %s15, 0
    %p110 = por %p108, %p109
    %p111 = scmp.le.s32.totalorder 1, %s9
    %p112 = scmp.lt.s32.totalorder %s9, 3
    %p113 = pnand %p111, %p112
    %p114 = pneg %p113
    // Predicated region
    $region9: #{autoencoder_forward.9} parent=5 // pred_check
      _
    $region10: #{autoencoder_forward.9} parent=5 // pred_check_branch
      %116 = sbr.rel (%p113) target = $region12
    $region11: #{autoencoder_forward.9} parent=5 // pred_region
      %s117 = ssub.s32 %s9, 1
      // Predicated region
      $region13: #{autoencoder_forward.9} parent=11 // pred_check
        %p118 = pneg %p56
      $region14: #{autoencoder_forward.9} parent=11 // pred_check_branch
        %120 = sbr.rel (%p118) target = $region16
      $region15: #{autoencoder_forward.9} parent=11 // pred_region
        _
      $region16: #{autoencoder_forward.9} parent=11 // pred_fallthru
        _
      // Predicated region
      $region17: #{autoencoder_forward.9} parent=11 // pred_check
        %p121 = pneg %p77
      $region18: #{autoencoder_forward.9} parent=11 // pred_check_branch
        %123 = sbr.rel (%p121) target = $region20
      $region19: #{autoencoder_forward.9} parent=11 // pred_region
        _
      $region20: #{autoencoder_forward.9} parent=11 // pred_fallthru
        _
    $region12: #{autoencoder_forward.9} parent=5 // pred_fallthru
      _
    %p124 = scmp.lt.s32.totalorder %s9, 2
    // Predicated region
    $region21: #{autoencoder_forward.9} parent=5 // pred_check
      %p125 = pneg %p124
    $region22: #{autoencoder_forward.9} parent=5 // pred_check_branch
      %127 = sbr.rel (%p125) target = $region24
    $region23: #{autoencoder_forward.9} parent=5 // pred_region
      // Predicated region
      $region25: #{autoencoder_forward.9} parent=23 // pred_check
        %p128 = pneg %p29
      $region26: #{autoencoder_forward.9} parent=23 // pred_check_branch
        %130 = sbr.rel (%p128) target = $region28
      $region27: #{autoencoder_forward.9} parent=23 // pred_region
        %s131 = smul.u32 38, %s9
        %p132 = scmp.lt.s32.totalorder %s131, 75
        %s133 = scalar_select %p132, %s131, 75
        %s134 = smul.addr %s133, 4
        %s135 = scalar_lea.vmem %s0, %s134
        %s136 = smul.u32 38, %s9
      $region28: #{autoencoder_forward.9} parent=23 // pred_fallthru
        _
    $region24: #{autoencoder_forward.9} parent=5 // pred_fallthru
      _
    %p137 = scmp.le.s32.totalorder 1, %s9
    %p138 = scmp.lt.s32.totalorder %s9, 3
    %p139 = pnand %p137, %p138
    %p140 = pneg %p139
    // Predicated region
    $region29: #{autoencoder_forward.9} parent=5 // pred_check
      _
    $region30: #{autoencoder_forward.9} parent=5 // pred_check_branch
      %142 = sbr.rel (%p139) target = $region32
    $region31: #{autoencoder_forward.9} parent=5 // pred_region
      %s143 = ssub.s32 %s9, 1
      %s144 = smul.u32 38, %s14
      %p145 = scmp.lt.s32.totalorder %s144, 75
      %s146 = scalar_select %p145, %s144, 75
      %s147 = smul.addr %s146, 4
      %s148 = scalar_lea.vmem %s0, %s147
      %p149 = pneg %p35
      %p150 = pneg %p32
      %p151 = pneg %p56
      %p152 = pneg %p53
      %p153 = pneg %p77
      %p154 = pneg %p74
      %p155 = pneg %p103
      %p156 = pneg %p100
      %s157 = smul.u32 38, %s14
      %p158 = scmp.lt.s32.totalorder %s157, 75
      %s159 = scalar_select %p158, %s157, 75
      %s160 = smul.addr %s159, 8
      %s161 = scalar_lea.vmem %s3, %s160
      %s162 = smul.u32 38, %s14
      %p163 = scmp.lt.s32.totalorder %s162, 75
      %s164 = scalar_select %p163, %s162, 75
      %s165 = smul.addr %s164, 4
      %s166 = scalar_lea.vmem %s0, %s165
      %s167 = smul.u32 38, %s14
      %s168 = smul.u32 38, %s14
      %p169 = scmp.lt.s32.totalorder %s168, 75
      %s170 = scalar_select %p169, %s168, 75
      %s171 = smul.addr %s170, 8
      %s172 = scalar_lea.vmem %s3, %s171
      %s173 = smul.u32 38, %s14
      %v175 = vld [vmem:[%s166] sm:$0xf]
      %v176 = vld [vmem:[%s166 + $0x4] sm:$0xf]
      %v177 = vld [vmem:[%s166 + $0x8] sm:$0xf]
      %v178 = vld [vmem:[%s166 + $0xc] sm:$0xf]
      %v179 = vld [vmem:[%s166 + $0x10] sm:$0xf]
      %v180 = vld [vmem:[%s166 + $0x14] sm:$0xf]
      %v181 = vld [vmem:[%s166 + $0x18] sm:$0xf]
      %v182 = vld [vmem:[%s166 + $0x1c] sm:$0xf]
      %v183 = vld [vmem:[%s166 + $0x20] sm:$0xf]
      %v184 = vld [vmem:[%s166 + $0x24] sm:$0xf]
      %v185 = vld [vmem:[%s166 + $0x28] sm:$0xf]
      %v186 = vld [vmem:[%s166 + $0x2c] sm:$0xf]
      %v187 = vld [vmem:[%s166 + $0x30] sm:$0xf]
      %v188 = vld [vmem:[%s166 + $0x34] sm:$0xf]
      %v189 = vld [vmem:[%s166 + $0x38] sm:$0xf]
      %v190 = vld [vmem:[%s166 + $0x3c] sm:$0xf]
      %v191 = vld [vmem:[%s166 + $0x40] sm:$0xf]
      %v192 = vld [vmem:[%s166 + $0x44] sm:$0xf]
      %v193 = vld [vmem:[%s166 + $0x48] sm:$0xf]
      %v194 = vld [vmem:[%s166 + $0x4c] sm:$0xf]
      %v195 = vld [vmem:[%s166 + $0x50] sm:$0xf]
      %v196 = vld [vmem:[%s166 + $0x54] sm:$0xf]
      %v197 = vld [vmem:[%s166 + $0x58] sm:$0xf]
      %v198 = vld [vmem:[%s166 + $0x5c] sm:$0xf]
      %v199 = vld [vmem:[%s166 + $0x60] sm:$0xf]
      %v200 = vld [vmem:[%s166 + $0x64] sm:$0xf]
      %v201 = vld [vmem:[%s166 + $0x68] sm:$0xf]
      %v202 = vld [vmem:[%s166 + $0x6c] sm:$0xf]
      %v203 = vld [vmem:[%s166 + $0x70] sm:$0xf]
      %v204 = vld [vmem:[%s166 + $0x74] sm:$0xf]
      %v205 = vld [vmem:[%s166 + $0x78] sm:$0xf]
      %v206 = vld [vmem:[%s166 + $0x7c] sm:$0xf]
      %v207 = vld [vmem:[%s166 + $0x80] sm:$0xf]
      %v208 = vld [vmem:[%s166 + $0x84] sm:$0xf]
      %v209 = vld [vmem:[%s166 + $0x88] sm:$0xf]
      %v210 = vld [vmem:[%s166 + $0x8c] sm:$0xf]
      %v211 = vld [vmem:[%s166 + $0x90] sm:$0xf]
      %v212 = vld [vmem:[%s166 + $0x94] sm:$0xf]
      %v213 = vld [vmem:[%s1] sm:$0xf]
      %v214 = vld [vmem:[%s1 + $0x4] sm:$0xf]
      %v215 = vld [vmem:[%s1 + $0x8] sm:$0xf]
      %v216 = vld [vmem:[%s1 + $0xc] sm:$0xf]
      %v217 = vld [vmem:[%s2] sm:$0x1]
      %v219 = vlaneseq
      %v220 = vshrl.u32 %v219, 7
      %v221 = vsub.s32 0, %v220
      %v222 = vrot.slane %v217, %v221
      %v262 = vunpack.c.l.b16 %v175
      %v263 = vunpack.c.l.b16 %v176
      %v264 = vunpack.c.l.b16 %v177
      %v265 = vunpack.c.l.b16 %v178
      %v266 = vunpack.c.l.b16 %v179
      %v267 = vunpack.c.l.b16 %v180
      %v268 = vunpack.c.l.b16 %v181
      %v269 = vunpack.c.l.b16 %v182
      %v270 = vunpack.c.l.b16 %v183
      %v271 = vunpack.c.l.b16 %v184
      %v272 = vunpack.c.l.b16 %v185
      %v273 = vunpack.c.l.b16 %v186
      %v274 = vunpack.c.l.b16 %v187
      %v275 = vunpack.c.l.b16 %v188
      %v276 = vunpack.c.l.b16 %v189
      %v277 = vunpack.c.l.b16 %v190
      %v278 = vunpack.c.l.b16 %v191
      %v279 = vunpack.c.l.b16 %v192
      %v280 = vunpack.c.l.b16 %v193
      %v281 = vunpack.c.l.b16 %v194
      %v282 = vunpack.c.l.b16 %v195
      %v283 = vunpack.c.l.b16 %v196
      %v284 = vunpack.c.l.b16 %v197
      %v285 = vunpack.c.l.b16 %v198
      %v286 = vunpack.c.l.b16 %v199
      %v287 = vunpack.c.l.b16 %v200
      %v288 = vunpack.c.l.b16 %v201
      %v289 = vunpack.c.l.b16 %v202
      %v290 = vunpack.c.l.b16 %v203
      %v291 = vunpack.c.l.b16 %v204
      %v292 = vunpack.c.l.b16 %v205
      %v293 = vunpack.c.l.b16 %v206
      %v294 = vunpack.c.l.b16 %v207
      %v295 = vunpack.c.l.b16 %v208
      %v296 = vunpack.c.l.b16 %v209
      %v297 = vunpack.c.l.b16 %v210
      %v298 = vunpack.c.l.b16 %v211
      %v299 = vunpack.c.l.b16 %v212
      %v300 = vpack.c.b16 %v263, %v262
      %v301 = vpack.c.b16 %v265, %v264
      %v302 = vpack.c.b16 %v267, %v266
      %v303 = vpack.c.b16 %v269, %v268
      %v304 = vpack.c.b16 %v271, %v270
      %v305 = vpack.c.b16 %v273, %v272
      %v306 = vpack.c.b16 %v275, %v274
      %v307 = vpack.c.b16 %v277, %v276
      %v308 = vpack.c.b16 %v279, %v278
      %v309 = vpack.c.b16 %v281, %v280
      %v310 = vpack.c.b16 %v283, %v282
      %v311 = vpack.c.b16 %v285, %v284
      %v312 = vpack.c.b16 %v287, %v286
      %v313 = vpack.c.b16 %v289, %v288
      %v314 = vpack.c.b16 %v291, %v290
      %v315 = vpack.c.b16 %v293, %v292
      %v316 = vpack.c.b16 %v295, %v294
      %v317 = vpack.c.b16 %v297, %v296
      %v318 = vpack.c.b16 %v299, %v298
      %v323 = vunpack.c.l.b16 %v213
      %v324 = vunpack.c.l.b16 %v214
      %v325 = vunpack.c.l.b16 %v215
      %v326 = vunpack.c.l.b16 %v216
      %v327 = vpack.c.b16 %v324, %v323
      %v328 = vpack.c.b16 %v326, %v325
      %vm331 = vcmask 261120
      %v333 = vsel %vm331, %v300, 0
      %v336 = vsel %vm331, %v301, 0
      %v339 = vsel %vm331, %v302, 0
      %v342 = vsel %vm331, %v303, 0
      %v345 = vsel %vm331, %v304, 0
      %v348 = vsel %vm331, %v305, 0
      %v351 = vsel %vm331, %v306, 0
      %v354 = vsel %vm331, %v307, 0
      %v357 = vsel %vm331, %v308, 0
      %v360 = vsel %vm331, %v309, 0
      %v363 = vsel %vm331, %v310, 0
      %v366 = vsel %vm331, %v311, 0
      %v369 = vsel %vm331, %v312, 0
      %v372 = vsel %vm331, %v313, 0
      %v375 = vsel %vm331, %v314, 0
      %v378 = vsel %vm331, %v315, 0
      %v381 = vsel %vm331, %v316, 0
      %v384 = vsel %vm331, %v317, 0
      %v387 = vsel %vm331, %v318, 0
      %389 = vmatprep.subr.bf16.mxu0 0
      %390 = vmatpush1.bf16.msra.mxu0 %v327
      %391 = vmatprep.subr.bf16.mxu0 0
      %392 = vmatpush1.bf16.msra.mxu0 %v328
      %393 = vmatprep.subr.bf16.mxu0 0
      %394 = vmatpush1.bf16.msra.mxu0 0
      %395 = vmatprep.subr.bf16.mxu0 0
      %396 = vmatpush1.bf16.msra.mxu0 0
      %397 = vmatprep.subr.bf16.mxu0 0
      %398 = vmatpush1.bf16.msra.mxu0 0
      %399 = vmatprep.subr.bf16.mxu0 0
      %400 = vmatpush1.bf16.msra.mxu0 0
      %401 = vmatprep.subr.bf16.mxu0 0
      %402 = vmatpush1.bf16.msra.mxu0 0
      %403 = vmatprep.subr.bf16.mxu0 0
      %404 = vmatpush1.bf16.msra.mxu0 0
      %405 = vmatprep.subr.bf16.mxu0 0
      %406 = vmatpush1.bf16.msra.mxu0 0
      %407 = vmatprep.subr.bf16.mxu0 0
      %408 = vmatpush1.bf16.msra.mxu0 0
      %409 = vmatprep.subr.bf16.mxu0 0
      %410 = vmatpush1.bf16.msra.mxu0 0
      %411 = vmatprep.subr.bf16.mxu0 0
      %412 = vmatpush1.bf16.msra.mxu0 0
      %413 = vmatprep.subr.bf16.mxu0 0
      %414 = vmatpush1.bf16.msra.mxu0 0
      %415 = vmatprep.subr.bf16.mxu0 0
      %416 = vmatpush1.bf16.msra.mxu0 0
      %417 = vmatprep.subr.bf16.mxu0 0
      %418 = vmatpush1.bf16.msra.mxu0 0
      %419 = vmatprep.subr.bf16.mxu0 0
      %420 = vmatpush1.bf16.msra.mxu0 0
      %421 = vmatprep.mubr.bf16.mxu0 0
      %422 = vmatmul.mubr.bf16.gmra.mrb[0].mxu0 %v333
      %v423 = vpop.f32.mrb[0].mxu0
      %v424 = vadd.f32 %v222, %v423
      %v425 = vpop.f32.mrb[0].mxu0
      %v426 = vpop.f32.mrb[0].mxu0
      %v427 = vadd.f32 %v222, %v426
      %v428 = vpop.f32.mrb[0].mxu0
      %429 = vmatprep.mubr.bf16.mxu0 0
      %430 = vmatmul.mubr.bf16.gmra.mrb[0].mxu0 %v336
      %v431 = vpop.f32.mrb[0].mxu0
      %v432 = vadd.f32 %v222, %v431
      %v433 = vpop.f32.mrb[0].mxu0
      %v434 = vpop.f32.mrb[0].mxu0
      %v435 = vadd.f32 %v222, %v434
      %v436 = vpop.f32.mrb[0].mxu0
      %437 = vmatprep.mubr.bf16.mxu0 0
      %438 = vmatmul.mubr.bf16.gmra.mrb[0].mxu0 %v339
      %v439 = vpop.f32.mrb[0].mxu0
      %v440 = vadd.f32 %v222, %v439
      %v441 = vpop.f32.mrb[0].mxu0
      %v442 = vpop.f32.mrb[0].mxu0
      %v443 = vadd.f32 %v222, %v442
      %v444 = vpop.f32.mrb[0].mxu0
      %445 = vmatprep.mubr.bf16.mxu0 0
      %446 = vmatmul.mubr.bf16.gmra.mrb[0].mxu0 %v342
      %v447 = vpop.f32.mrb[0].mxu0
      %v448 = vadd.f32 %v222, %v447
      %v449 = vpop.f32.mrb[0].mxu0
      %v450 = vpop.f32.mrb[0].mxu0
      %v451 = vadd.f32 %v222, %v450
      %v452 = vpop.f32.mrb[0].mxu0
      %453 = vmatprep.mubr.bf16.mxu0 0
      %454 = vmatmul.mubr.bf16.gmra.mrb[0].mxu0 %v345
      %v455 = vpop.f32.mrb[0].mxu0
      %v456 = vadd.f32 %v222, %v455
      %v457 = vpop.f32.mrb[0].mxu0
      %v458 = vpop.f32.mrb[0].mxu0
      %v459 = vadd.f32 %v222, %v458
      %v460 = vpop.f32.mrb[0].mxu0
      %461 = vmatprep.mubr.bf16.mxu0 0
      %462 = vmatmul.mubr.bf16.gmra.mrb[0].mxu0 %v348
      %v463 = vpop.f32.mrb[0].mxu0
      %v464 = vadd.f32 %v222, %v463
      %v465 = vpop.f32.mrb[0].mxu0
      %v466 = vpop.f32.mrb[0].mxu0
      %v467 = vadd.f32 %v222, %v466
      %v468 = vpop.f32.mrb[0].mxu0
      %469 = vmatprep.mubr.bf16.mxu0 0
      %470 = vmatmul.mubr.bf16.gmra.mrb[0].mxu0 %v351
      %v471 = vpop.f32.mrb[0].mxu0
      %v472 = vadd.f32 %v222, %v471
      %v473 = vpop.f32.mrb[0].mxu0
      %v474 = vpop.f32.mrb[0].mxu0
      %v475 = vadd.f32 %v222, %v474
      %v476 = vpop.f32.mrb[0].mxu0
      %477 = vmatprep.mubr.bf16.mxu0 0
      %478 = vmatmul.mubr.bf16.gmra.mrb[0].mxu0 %v354
      %v479 = vpop.f32.mrb[0].mxu0
      %v480 = vadd.f32 %v222, %v479
      %v481 = vpop.f32.mrb[0].mxu0
      %v482 = vpop.f32.mrb[0].mxu0
      %v483 = vadd.f32 %v222, %v482
      %v484 = vpop.f32.mrb[0].mxu0
      %485 = vmatprep.mubr.bf16.mxu0 0
      %486 = vmatmul.mubr.bf16.gmra.mrb[0].mxu0 %v357
      %v487 = vpop.f32.mrb[0].mxu0
      %v488 = vadd.f32 %v222, %v487
      %v489 = vpop.f32.mrb[0].mxu0
      %v490 = vpop.f32.mrb[0].mxu0
      %v491 = vadd.f32 %v222, %v490
      %v492 = vpop.f32.mrb[0].mxu0
      %493 = vmatprep.mubr.bf16.mxu0 0
      %494 = vmatmul.mubr.bf16.gmra.mrb[0].mxu0 %v360
      %v495 = vpop.f32.mrb[0].mxu0
      %v496 = vadd.f32 %v222, %v495
      %v497 = vpop.f32.mrb[0].mxu0
      %v498 = vpop.f32.mrb[0].mxu0
      %v499 = vadd.f32 %v222, %v498
      %v500 = vpop.f32.mrb[0].mxu0
      %501 = vmatprep.mubr.bf16.mxu0 0
      %502 = vmatmul.mubr.bf16.gmra.mrb[0].mxu0 %v363
      %v503 = vpop.f32.mrb[0].mxu0
      %v504 = vadd.f32 %v222, %v503
      %v505 = vpop.f32.mrb[0].mxu0
      %v506 = vpop.f32.mrb[0].mxu0
      %v507 = vadd.f32 %v222, %v506
      %v508 = vpop.f32.mrb[0].mxu0
      %509 = vmatprep.mubr.bf16.mxu0 0
      %510 = vmatmul.mubr.bf16.gmra.mrb[0].mxu0 %v366
      %v511 = vpop.f32.mrb[0].mxu0
      %v512 = vadd.f32 %v222, %v511
      %v513 = vpop.f32.mrb[0].mxu0
      %v514 = vpop.f32.mrb[0].mxu0
      %v515 = vadd.f32 %v222, %v514
      %v516 = vpop.f32.mrb[0].mxu0
      %517 = vmatprep.mubr.bf16.mxu0 0
      %518 = vmatmul.mubr.bf16.gmra.mrb[0].mxu0 %v369
      %v519 = vpop.f32.mrb[0].mxu0
      %v520 = vadd.f32 %v222, %v519
      %v521 = vpop.f32.mrb[0].mxu0
      %v522 = vpop.f32.mrb[0].mxu0
      %v523 = vadd.f32 %v222, %v522
      %v524 = vpop.f32.mrb[0].mxu0
      %525 = vmatprep.mubr.bf16.mxu0 0
      %526 = vmatmul.mubr.bf16.gmra.mrb[0].mxu0 %v372
      %v527 = vpop.f32.mrb[0].mxu0
      %v528 = vadd.f32 %v222, %v527
      %v529 = vpop.f32.mrb[0].mxu0
      %v530 = vpop.f32.mrb[0].mxu0
      %v531 = vadd.f32 %v222, %v530
      %v532 = vpop.f32.mrb[0].mxu0
      %533 = vmatprep.mubr.bf16.mxu0 0
      %534 = vmatmul.mubr.bf16.gmra.mrb[0].mxu0 %v375
      %v535 = vpop.f32.mrb[0].mxu0
      %v536 = vadd.f32 %v222, %v535
      %v537 = vpop.f32.mrb[0].mxu0
      %v538 = vpop.f32.mrb[0].mxu0
      %v539 = vadd.f32 %v222, %v538
      %v540 = vpop.f32.mrb[0].mxu0
      %541 = vmatprep.mubr.bf16.mxu0 0
      %542 = vmatmul.mubr.bf16.gmra.mrb[0].mxu0 %v378
      %v543 = vpop.f32.mrb[0].mxu0
      %v544 = vadd.f32 %v222, %v543
      %v545 = vpop.f32.mrb[0].mxu0
      %v546 = vpop.f32.mrb[0].mxu0
      %v547 = vadd.f32 %v222, %v546
      %v548 = vpop.f32.mrb[0].mxu0
      %549 = vmatprep.mubr.bf16.mxu0 0
      %550 = vmatmul.mubr.bf16.gmra.mrb[0].mxu0 %v381
      %v551 = vpop.f32.mrb[0].mxu0
      %v552 = vadd.f32 %v222, %v551
      %v553 = vpop.f32.mrb[0].mxu0
      %v554 = vpop.f32.mrb[0].mxu0
      %v555 = vadd.f32 %v222, %v554
      %v556 = vpop.f32.mrb[0].mxu0
      %557 = vmatprep.mubr.bf16.mxu0 0
      %558 = vmatmul.mubr.bf16.gmra.mrb[0].mxu0 %v384
      %v559 = vpop.f32.mrb[0].mxu0
      %v560 = vadd.f32 %v222, %v559
      %v561 = vpop.f32.mrb[0].mxu0
      %v562 = vpop.f32.mrb[0].mxu0
      %v563 = vadd.f32 %v222, %v562
      %v564 = vpop.f32.mrb[0].mxu0
      %565 = vmatprep.mubr.bf16.mxu0 0
      %566 = vmatmul.mubr.bf16.gmra.mrb[0].mxu0 %v387
      %v567 = vpop.f32.mrb[0].mxu0
      %v568 = vadd.f32 %v222, %v567
      %v569 = vpop.f32.mrb[0].mxu0
      %v570 = vpop.f32.mrb[0].mxu0
      %v571 = vadd.f32 %v222, %v570
      %v572 = vpop.f32.mrb[0].mxu0
      %573 = vdwg.mxu0
      %v574 = vtanh.pop %v424
      %v575 = vtanh.pop %v427
      %v576 = vtanh.pop %v432
      %v577 = vtanh.pop %v435
      %v578 = vtanh.pop %v440
      %v579 = vtanh.pop %v443
      %v580 = vtanh.pop %v448
      %v581 = vtanh.pop %v451
      %v582 = vtanh.pop %v456
      %v583 = vtanh.pop %v459
      %v584 = vtanh.pop %v464
      %v585 = vtanh.pop %v467
      %v586 = vtanh.pop %v472
      %v587 = vtanh.pop %v475
      %v588 = vtanh.pop %v480
      %v589 = vtanh.pop %v483
      %v590 = vtanh.pop %v488
      %v591 = vtanh.pop %v491
      %v592 = vtanh.pop %v496
      %v593 = vtanh.pop %v499
      %v594 = vtanh.pop %v504
      %v595 = vtanh.pop %v507
      %v596 = vtanh.pop %v512
      %v597 = vtanh.pop %v515
      %v598 = vtanh.pop %v520
      %v599 = vtanh.pop %v523
      %v600 = vtanh.pop %v528
      %v601 = vtanh.pop %v531
      %v602 = vtanh.pop %v536
      %v603 = vtanh.pop %v539
      %v604 = vtanh.pop %v544
      %v605 = vtanh.pop %v547
      %v606 = vtanh.pop %v552
      %v607 = vtanh.pop %v555
      %v608 = vtanh.pop %v560
      %v609 = vtanh.pop %v563
      %v610 = vtanh.pop %v568
      %v611 = vtanh.pop %v571
      %612 = vst [vmem:[%s172] sm:$0xff] %v574
      %613 = vst [vmem:[%s172 + $0x8] sm:$0xff] %v575
      %614 = vst [vmem:[%s172 + $0x10] sm:$0xff] %v576
      %615 = vst [vmem:[%s172 + $0x18] sm:$0xff] %v577
      %616 = vst [vmem:[%s172 + $0x20] sm:$0xff] %v578
      %617 = vst [vmem:[%s172 + $0x28] sm:$0xff] %v579
      %618 = vst [vmem:[%s172 + $0x30] sm:$0xff] %v580
      %619 = vst [vmem:[%s172 + $0x38] sm:$0xff] %v581
      %620 = vst [vmem:[%s172 + $0x40] sm:$0xff] %v582
      %621 = vst [vmem:[%s172 + $0x48] sm:$0xff] %v583
      %622 = vst [vmem:[%s172 + $0x50] sm:$0xff] %v584
      %623 = vst [vmem:[%s172 + $0x58] sm:$0xff] %v585
      %624 = vst [vmem:[%s172 + $0x60] sm:$0xff] %v586
      %625 = vst [vmem:[%s172 + $0x68] sm:$0xff] %v587
      %626 = vst [vmem:[%s172 + $0x70] sm:$0xff] %v588
      %627 = vst [vmem:[%s172 + $0x78] sm:$0xff] %v589
      %628 = vst [vmem:[%s172 + $0x80] sm:$0xff] %v590
      %629 = vst [vmem:[%s172 + $0x88] sm:$0xff] %v591
      %630 = vst [vmem:[%s172 + $0x90] sm:$0xff] %v592
      %631 = vst [vmem:[%s172 + $0x98] sm:$0xff] %v593
      %632 = vst [vmem:[%s172 + $0xa0] sm:$0xff] %v594
      %633 = vst [vmem:[%s172 + $0xa8] sm:$0xff] %v595
      %634 = vst [vmem:[%s172 + $0xb0] sm:$0xff] %v596
      %635 = vst [vmem:[%s172 + $0xb8] sm:$0xff] %v597
      %636 = vst [vmem:[%s172 + $0xc0] sm:$0xff] %v598
      %637 = vst [vmem:[%s172 + $0xc8] sm:$0xff] %v599
      %638 = vst [vmem:[%s172 + $0xd0] sm:$0xff] %v600
      %639 = vst [vmem:[%s172 + $0xd8] sm:$0xff] %v601
      %640 = vst [vmem:[%s172 + $0xe0] sm:$0xff] %v602
      %641 = vst [vmem:[%s172 + $0xe8] sm:$0xff] %v603
      %642 = vst [vmem:[%s172 + $0xf0] sm:$0xff] %v604
      %643 = vst [vmem:[%s172 + $0xf8] sm:$0xff] %v605
      %644 = vst [vmem:[%s172 + $0x100] sm:$0xff] %v606
      %645 = vst [vmem:[%s172 + $0x108] sm:$0xff] %v607
      %646 = vst [vmem:[%s172 + $0x110] sm:$0xff] %v608
      %647 = vst [vmem:[%s172 + $0x118] sm:$0xff] %v609
      %648 = vst [vmem:[%s172 + $0x120] sm:$0xff] %v610
      %649 = vst [vmem:[%s172 + $0x128] sm:$0xff] %v611
      %s650 = smul.u32 38, %s14
      %p651 = scmp.lt.s32.totalorder %s650, 75
      %s652 = scalar_select %p651, %s650, 75
      %s653 = smul.addr %s652, 8
      %s654 = scalar_lea.vmem %s3, %s653
      // Predicated region
      $region33: #{autoencoder_forward.9} parent=31 // pred_check
        %p655 = pneg %p100
      $region34: #{autoencoder_forward.9} parent=31 // pred_check_branch
        %657 = sbr.rel (%p655) target = $region36
      $region35: #{autoencoder_forward.9} parent=31 // pred_region
        %s658 = smul.u32 38, %s14
      $region36: #{autoencoder_forward.9} parent=31 // pred_fallthru
        _
    $region32: #{autoencoder_forward.9} parent=5 // pred_fallthru
      _
    %p659 = scmp.le.s32.totalorder 2, %s9
    // Predicated region
    $region37: #{autoencoder_forward.9} parent=5 // pred_check
      %p660 = pneg %p659
    $region38: #{autoencoder_forward.9} parent=5 // pred_check_branch
      %662 = sbr.rel (%p660) target = $region40
    $region39: #{autoencoder_forward.9} parent=5 // pred_region
      %s663 = ssub.s32 %s9, 2
      // Predicated region
      $region41: #{autoencoder_forward.9} parent=39 // pred_check
        %p664 = pneg %p106
      $region42: #{autoencoder_forward.9} parent=39 // pred_check_branch
        %666 = sbr.rel (%p664) target = $region44
      $region43: #{autoencoder_forward.9} parent=39 // pred_region
        %s667 = smul.u32 38, %s15
        %p668 = scmp.lt.s32.totalorder %s667, 75
        %s669 = scalar_select %p668, %s667, 75
        %s670 = smul.addr %s669, 8
        %s671 = scalar_lea.vmem %s3, %s670
      $region44: #{autoencoder_forward.9} parent=39 // pred_fallthru
        _
    $region40: #{autoencoder_forward.9} parent=5 // pred_fallthru
      _
  $region6: #{autoencoder_forward.9} parent=0 // loop_footer
    %s13 = sadd.s32 1, %s9
  $region7: #{autoencoder_forward.9} parent=0 // loop_footer_branch
    %8 = sbr.rel target = $region3
  $region8: #{autoencoder_forward.9} parent=0 // loop_exit
    _

</llo_original>
